<compile_context>
chip_gen: v6e
topology: v6e:2x2x1
jax: 0.10.0
libtpu: 0.0.40
codegen_flags: <defaults>
</compile_context>

<pallas_src>
import math
from functools import partial

import numpy as np
import jax
import jax.numpy as jnp
from jax.experimental import pallas as pl
from jax.experimental.pallas import tpu as pltpu


_OFFSETS = tuple((dh, dw) for dh in (-1, 0, 1) for dw in (-1, 0, 1))


def _shift_cols(a, s):
    """out[:, j] = a[:, j + s], zero-filled outside [0, N).  Static lane slices."""
    if s == 0:
        return a
    n = a.shape[1]
    z = jnp.zeros((a.shape[0], abs(s)), a.dtype)
    if s > 0:
        return jnp.concatenate([a[:, s:], z], axis=1)
    return jnp.concatenate([z, a[:, : n + s]], axis=1)


# ----------------------------------------------------------------------------
# The fused Pallas kernel (whole forward pass, all operands VMEM-resident)
# ----------------------------------------------------------------------------
def _transformer_cnn_kernel(
    tok_ref, emb_ref, tw_ref, tb_ref,
    cw_ref, cb_ref, m1_ref, m2_ref, m3_ref, g1_ref, g2_ref,
    fcw_ref, fcb_ref,
    out_ref,
    *, num_layers, d_model, d_hidden, n_classes, H_img, W_img, conv_ch, eps):
    f32, bf16 = jnp.float32, jnp.bfloat16
    L = tok_ref.shape[0]
    V = emb_ref.shape[0]

    # --- embedding lookup as one-hot matmul; sqrt(E) scale and the (constant)
    #     positional-encoding row are pre-folded into the table ----------------
    onehot = (tok_ref[...] == jax.lax.broadcasted_iota(jnp.int32, (L, V), 1)
              ).astype(f32).astype(bf16)
    x = jnp.dot(onehot, emb_ref[...], preferred_element_type=f32)        # (L, E)

    # --- transformer encoder layers ------------------------------------------
    # seq_len == 1  =>  softmax over one key == 1  =>  MHA == out_proj(v_proj(x))
    # which is folded offline into a single (E, E) matrix aT and bias ab.
    def layer_norm(y, g, b):
        mu = jnp.mean(y, axis=-1, keepdims=True)
        yc = y - mu
        var = jnp.mean(yc * yc, axis=-1, keepdims=True)
        return yc * jax.lax.rsqrt(var + eps) * g + b

    def brow(r, w):                       # one packed bias/gamma/beta row (1, w)
        return tb_ref[r:r + 1, :w]

    for l in range(num_layers):
        aT = tw_ref[3 * l + 0, :d_model, :d_model]                 # (E, E) bf16
        w1T = tw_ref[3 * l + 1, :d_model, :d_hidden]               # (E, H) bf16
        w2T = tw_ref[3 * l + 2, :d_hidden, :d_model]               # (H, E) bf16
        b = 7 * l
        attn = (jnp.dot(x.astype(bf16), aT, preferred_element_type=f32)
                + brow(b + 0, d_model))
        x = layer_norm(x + attn, brow(b + 3, d_model), brow(b + 4, d_model))
        h = jnp.maximum(
            jnp.dot(x.astype(bf16), w1T, preferred_element_type=f32)
            + brow(b + 1, d_hidden), 0.0)
        ff = (jnp.dot(h.astype(bf16), w2T, preferred_element_type=f32)
              + brow(b + 2, d_model))
        x = layer_norm(x + ff, brow(b + 5, d_model), brow(b + 6, d_model))

    # --- CNN stack.  Layout: channels on sublanes, flattened spatial on lanes:
    #     A[c, h*W + w]; each conv is ONE im2col matmul, each pool is 3 shifted
    #     maxes + one even-(h,w) selection matmul. -----------------------------
    def conv3x3_relu(a, W, w_bf, bias, mask_ref):
        # a: (C_in, HW) f32; w_bf: (C_out, 9*C_in) bf16; mask: (9*C_in, HW) f32.
        wins = [_shift_cols(a, dh * W + dw) for (dh, dw) in _OFFSETS]
        stack = jnp.concatenate(wins, axis=0) * mask_ref[...]       # (9*C_in, HW)
        y = jnp.dot(w_bf, stack.astype(bf16), preferred_element_type=f32) + bias
        return jnp.maximum(y, 0.0)                                   # (C_out, HW)

    def maxpool2x2(a, W, g_ref):
        # Only even-(h, w) positions of m survive the selector; for those all
        # three shifted reads are in range, so no edge masking is needed.
        m = jnp.maximum(jnp.maximum(a, _shift_cols(a, 1)),
                        jnp.maximum(_shift_cols(a, W), _shift_cols(a, W + 1)))
        return jnp.dot(m.astype(bf16), g_ref[...], preferred_element_type=f32)

    c0, c1, c2, c3 = conv_ch

    # transformer output (L, E) is the single-channel image (H=L, W=E); flatten
    # row-major onto lanes once (static row slices + one lane concat; a value
    # reshape (L,E)->(1,L*E) is not relied upon for Mosaic portability).
    a = jnp.concatenate([x[h:h + 1, :] for h in range(H_img)], axis=1)  # (1, HW)

    a = conv3x3_relu(a, W_img, cw_ref[0, :c1, :9 * c0], cb_ref[0, :c1], m1_ref)
    a = maxpool2x2(a, W_img, g1_ref)
    a = conv3x3_relu(a, W_img // 2, cw_ref[1, :c2, :9 * c1], cb_ref[1, :c2], m2_ref)
    a = maxpool2x2(a, W_img // 2, g2_ref)
    a = conv3x3_relu(a, W_img // 4, cw_ref[2, :c3, :9 * c2], cb_ref[2, :c3], m3_ref)

    # --- flatten in torch (C, H, W) order -> (1, C*H*W); fc1+relu; fc2+sigmoid -
    flat = jnp.concatenate([a[c:c + 1, :] for c in range(c3)], axis=1)
    fd = flat.shape[1]
    h1 = jnp.maximum(
        jnp.dot(flat.astype(bf16), fcw_ref[:fd, :d_hidden],
                preferred_element_type=f32) + fcb_ref[0:1, :d_hidden], 0.0)
    logits = (jnp.dot(h1.astype(bf16), fcw_ref[fd:fd + d_hidden, :n_classes],
                      preferred_element_type=f32) + fcb_ref[1:2, :n_classes])
    out_ref[...] = jax.nn.sigmoid(logits)


def _vmem_spec(shape):
    return pl.BlockSpec(shape, lambda i, _n=len(shape): (0,) * _n)


# ----------------------------------------------------------------------------
# Hoisted constant / weight preparation (runs once, outside forward())
# ----------------------------------------------------------------------------
def _positional_table(d_model, max_len=5000):
    position = np.arange(max_len, dtype=np.float32)[:, None]
    div_term = np.exp(np.arange(0, d_model, 2, dtype=np.float32)
                      * (-math.log(10000.0) / d_model))
    pe = np.zeros((max_len, d_model), dtype=np.float32)
    pe[:, 0::2] = np.sin(position * div_term)
    pe[:, 1::2] = np.cos(position * div_term)
    return jnp.asarray(pe)


def _im2col_masks(H, W, c_in):
    """(9*c_in, H*W) validity mask for the stacked shifted windows (pad=1)."""
    hw = H * W
    hh = np.arange(hw) // W
    ww = np.arange(hw) % W
    rows = []
    for dh, dw in _OFFSETS:
        valid = ((hh + dh >= 0) & (hh + dh < H) &
                 (ww + dw >= 0) & (ww + dw < W)).astype(np.float32)
        rows.append(np.tile(valid[None, :], (c_in, 1)))
    return jnp.asarray(np.concatenate(rows, axis=0))


def _pool_select(H, W):
    """(H*W, H*W/4) selector picking the (even h, even w) pixel of each 2x2 block."""
    Ho, Wo = H // 2, W // 2
    g = np.zeros((H * W, Ho * Wo), dtype=np.float32)
    for i in range(Ho):
        for j in range(Wo):
            g[(2 * i) * W + 2 * j, i * Wo + j] = 1.0
    return jnp.asarray(g)


def _pad_to(a, shape):
    return jnp.pad(a, [(0, s - d) for d, s in zip(a.shape, shape)])


def prepare_params(hp, raw):
    """Repack PyTorch-layout parameters into the packed slabs the kernel consumes."""
    E, H = hp["embedding_size"], hp["num_of_hidden"]
    L, ncls = hp["sent_len"], hp["num_of_classes"]
    f32, bf16 = jnp.float32, jnp.bfloat16
    D = max(E, H)

    # embedding table pre-scaled by sqrt(E) and pre-offset by PE row 0 (seq==1)
    pe0 = np.asarray(_positional_table(E))[0]
    emb = raw["embedding"].astype(f32) * math.sqrt(E) + jnp.asarray(pe0)[None, :]

    tw_rows, tb_rows = [], []
    for lp in raw["layers"]:
        Wv = np.asarray(lp["in_proj_w"], np.float32)[2 * E:]
        bv = np.asarray(lp["in_proj_b"], np.float32)[2 * E:]
        Wo = np.asarray(lp["out_proj_w"], np.float32)
        bo = np.asarray(lp["out_proj_b"], np.float32)
        aT = jnp.asarray(Wv.T @ Wo.T)            # x @ aT == out_proj(v_proj(x))
        ab = jnp.asarray(bv @ Wo.T + bo)
        tw_rows += [_pad_to(aT, (D, D)),
                    _pad_to(lp["lin1_w"].T.astype(f32), (D, D)),
                    _pad_to(lp["lin2_w"].T.astype(f32), (D, D))]
        tb_rows += [_pad_to(ab, (D,)),
                    _pad_to(lp["lin1_b"].astype(f32), (D,)),
                    _pad_to(lp["lin2_b"].astype(f32), (D,)),
                    _pad_to(lp["norm1_g"].astype(f32), (D,)),
                    _pad_to(lp["norm1_b"].astype(f32), (D,)),
                    _pad_to(lp["norm2_g"].astype(f32), (D,)),
                    _pad_to(lp["norm2_b"].astype(f32), (D,))]

    def conv_repack(w):                    # (Cout, Cin, 3, 3) -> (Cout, 9*Cin)
        co, ci = w.shape[0], w.shape[1]
        return jnp.transpose(w.astype(f32), (0, 2, 3, 1)).reshape(co, 9 * ci)

    convs = raw["convs"]
    co_max = max(c["w"].shape[0] for c in convs)
    k_max = max(9 * c["w"].shape[1] for c in convs)
    cw = jnp.stack([_pad_to(conv_repack(c["w"]), (co_max, k_max)) for c in convs])
    cb = jnp.stack([_pad_to(c["b"].astype(f32).reshape(-1, 1), (co_max, 1))
                    for c in convs])

    H1, W1 = L, E
    H2, W2 = H1 // 2, W1 // 2
    H3, W3 = H2 // 2, W2 // 2
    ci1, ci2, ci3 = (convs[0]["w"].shape[1], convs[1]["w"].shape[1],
                     convs[2]["w"].shape[1])

    flat_dim = raw["fc1_w"].shape[1]
    Wfc = max(H, ncls)
    fcw = jnp.concatenate(
        [_pad_to(raw["fc1_w"].T.astype(f32), (flat_dim, Wfc)),
         _pad_to(raw["fc2_w"].T.astype(f32), (H, Wfc))], axis=0)
    fcb = jnp.stack([_pad_to(raw["fc1_b"].astype(f32), (Wfc,)),
                     _pad_to(raw["fc2_b"].astype(f32), (Wfc,))])

    return dict(
        emb=emb.astype(bf16),                        # (V, E)
        tw=jnp.stack(tw_rows).astype(bf16),          # (3*nl, D, D)
        tb=jnp.stack(tb_rows).astype(f32),           # (7*nl, D)
        cw=cw.astype(bf16),                          # (3, co_max, k_max)
        cb=cb.astype(f32),                           # (3, co_max, 1)
        m1=_im2col_masks(H1, W1, ci1).astype(f32),   # (9,  H1*W1)
        m2=_im2col_masks(H2, W2, ci2).astype(f32),   # (36, H2*W2)
        m3=_im2col_masks(H3, W3, ci3).astype(f32),   # (72, H3*W3)
        g1=_pool_select(H1, W1).astype(bf16),        # exact 0/1 selector, bf16
        g2=_pool_select(H2, W2).astype(bf16),
        fcw=fcw.astype(bf16),                        # (flat_dim + H, Wfc)
        fcb=fcb.astype(f32),                         # (2, Wfc)
    )


# ----------------------------------------------------------------------------
# Forward wrapper: one pallas_call for the whole model
# ----------------------------------------------------------------------------
def make_forward(hp):
    E, H, L = hp["embedding_size"], hp["num_of_hidden"], hp["sent_len"]
    nl, ncls = hp["num_of_layers"], hp["num_of_classes"]
    conv_ch = (hp["conv_params"][0][0], hp["conv_params"][0][1],
               hp["conv_params"][1][1], hp["conv_params"][2][1])
    assert E % hp["num_of_head"] == 0
    for (_, _, k, s, p) in hp["conv_params"]:
        assert k == 3 and s == 1 and p == 1, "fused kernel assumes 3x3/stride-1/pad-1"
    assert L % 4 == 0 and E % 4 == 0, "two 2x2 max-pools need H, W divisible by 4"
    assert conv_ch[0] == 1, "single-channel image from the transformer output"

    kernel = partial(_transformer_cnn_kernel,
                     num_layers=nl, d_model=E, d_hidden=H, n_classes=ncls,
                     H_img=L, W_img=E, conv_ch=conv_ch, eps=1e-5)

    def forward(prep, tokens):
        tok = tokens.reshape(L, 1).astype(jnp.int32)
        inputs = [tok, prep["emb"], prep["tw"], prep["tb"],
                  prep["cw"], prep["cb"], prep["m1"], prep["m2"], prep["m3"],
                  prep["g1"], prep["g2"], prep["fcw"], prep["fcb"]]
        out = pl.pallas_call(
            kernel,
            grid=(1,),
            in_specs=[_vmem_spec(v.shape) for v in inputs],
            out_specs=_vmem_spec((1, ncls)),
            out_shape=jax.ShapeDtypeStruct((1, ncls), jnp.float32),
            compiler_params=pltpu.CompilerParams(
                dimension_semantics=("arbitrary",)),
        )(*inputs)
        return out.reshape(-1)

    return forward


# ----------------------------------------------------------------------------
# Deterministic parameter construction (PyTorch-layout "raw" parameters)
# ----------------------------------------------------------------------------
def init_params(key, hp):
    E, H = hp["embedding_size"], hp["num_of_hidden"]
    ks = iter(jax.random.split(key, 128))

    def nrm(shape, scale=0.05):
        return scale * jax.random.normal(next(ks), shape, dtype=jnp.float32)

    emb = nrm((hp["vocab_size"], E), 0.1).at[0].set(0.0)   # padding_idx=0

    layers = []
    for _ in range(hp["num_of_layers"]):
        layers.append(dict(
            in_proj_w=nrm((3 * E, E)), in_proj_b=nrm((3 * E,)),
            out_proj_w=nrm((E, E)), out_proj_b=nrm((E,)),
            lin1_w=nrm((H, E)), lin1_b=nrm((H,)),
            lin2_w=nrm((E, H)), lin2_b=nrm((E,)),
            norm1_g=jnp.ones((E,), jnp.float32), norm1_b=jnp.zeros((E,), jnp.float32),
            norm2_g=jnp.ones((E,), jnp.float32), norm2_b=jnp.zeros((E,), jnp.float32),
        ))

    convs = []
    for (cin, cout, k, s, p) in hp["conv_params"]:
        convs.append(dict(w=nrm((cout, cin, k, k), 0.1), b=nrm((cout,), 0.1)))

    # conv_out_shape for this config (k=3, s=1, p=1 convs; two 2x2 pools)
    h_out, w_out = hp["sent_len"] // 4, E // 4
    flat = h_out * w_out * hp["conv_params"][2][1]
    return dict(
        embedding=emb, layers=layers, convs=convs,
        fc1_w=nrm((H, flat)), fc1_b=nrm((H,)),
        fc2_w=nrm((hp["num_of_classes"], H)), fc2_b=nrm((hp["num_of_classes"],)),
    )


# ----------------------------------------------------------------------------
# Pure-JAX reference (full attention math, lax.conv) for a sanity check
# ----------------------------------------------------------------------------
def _ref_layernorm(y, g, b, eps):
    mu = jnp.mean(y, axis=-1, keepdims=True)
    var = jnp.mean((y - mu) ** 2, axis=-1, keepdims=True)
    return (y - mu) * jax.lax.rsqrt(var + eps) * g + b


def _reference_forward(hp, raw, tokens):
    E, nh, eps = hp["embedding_size"], hp["num_of_head"], 1e-5
    with jax.default_matmul_precision("float32"):
        x = raw["embedding"][tokens[0]] * math.sqrt(E)          # (L, E)
        x = x[None]                                             # (S=1, N=L, E)
        pe = _positional_table(E)
        x = x + pe[: x.shape[0]][:, None, :]
        S, N, _ = x.shape
        dh = E // nh
        for lp in raw["layers"]:
            x2 = x.reshape(S * N, E)
            wq, wk, wv = lp["in_proj_w"][:E], lp["in_proj_w"][E:2 * E], lp["in_proj_w"][2 * E:]
            bq, bk, bv = lp["in_proj_b"][:E], lp["in_proj_b"][E:2 * E], lp["in_proj_b"][2 * E:]
            q = (x2 @ wq.T + bq).reshape(S, N, nh, dh)
            k = (x2 @ wk.T + bk).reshape(S, N, nh, dh)
            v = (x2 @ wv.T + bv).reshape(S, N, nh, dh)
            sc = jnp.einsum("snhd,tnhd->nhst", q, k) / math.sqrt(dh)
            w = jax.nn.softmax(sc, axis=-1)
            attn = jnp.einsum("nhst,tnhd->snhd", w, v).reshape(S * N, E)
            attn = attn @ lp["out_proj_w"].T + lp["out_proj_b"]
            y = _ref_layernorm(x2 + attn, lp["norm1_g"], lp["norm1_b"], eps)
            hid = jax.nn.relu(y @ lp["lin1_w"].T + lp["lin1_b"])
            ff = hid @ lp["lin2_w"].T + lp["lin2_b"]
            y = _ref_layernorm(y + ff, lp["norm2_g"], lp["norm2_b"], eps)
            x = y.reshape(S, N, E)

        def conv_relu(img, w, b, stride, pad):
            y = jax.lax.conv_general_dilated(
                img, w, window_strides=(stride, stride),
                padding=((pad, pad), (pad, pad)),
                dimension_numbers=("NCHW", "OIHW", "NCHW"))
            return jax.nn.relu(y + b[None, :, None, None])

        def pool(img):
            n, c, hh, ww = img.shape
            return img.reshape(n, c, hh // 2, 2, ww // 2, 2).max(axis=(3, 5))

        img = x[None]                                            # (1, 1, L, E)
        chp = hp["conv_params"]
        c1, c2, c3 = raw["convs"]
        y = pool(conv_relu(img, c1["w"], c1["b"], chp[0][3], chp[0][4]))
        y = pool(conv_relu(y, c2["w"], c2["b"], chp[1][3], chp[1][4]))
        y = conv_relu(y, c3["w"], c3["b"], chp[2][3], chp[2][4])
        flat = y.reshape(1, -1)                                  # (C, H, W) order
        hid = jax.nn.relu(flat @ raw["fc1_w"].T + raw["fc1_b"])
        out = jax.nn.sigmoid(hid @ raw["fc2_w"].T + raw["fc2_b"])
        return out.reshape(-1)


if __name__ == "__main__":
    hp = dict(
        vocab_size=32,
        embedding_size=32,
        num_of_head=4,
        num_of_hidden=32,
        num_of_layers=2,
        num_of_classes=4,
        dropout=0.1,          # inference -> identity
        sent_len=16,
        conv_params=[(1, 4, 3, 1, 1), (4, 8, 3, 1, 1), (8, 8, 3, 1, 1)],
    )
    key = jax.random.PRNGKey(0)
    pkey, dkey = jax.random.split(key)
    raw = init_params(pkey, hp)
    prep = prepare_params(hp, raw)            # hoisted: runs once, outside forward
    tokens = jax.random.randint(dkey, (1, hp["sent_len"]), 0, hp["vocab_size"],
                                dtype=jnp.int32)

    forward = jax.jit(make_forward(hp))
    out = jax.block_until_ready(forward(prep, tokens))

    assert out.shape == (hp["num_of_classes"],)
    assert bool(jnp.all(jnp.isfinite(out)))
    assert bool(jnp.all((out >= 0.0) & (out <= 1.0)))   # sigmoid output range

    # sanity check against a pure-JAX reference (full attention math, lax.conv);
    # tolerance covers bf16 MXU operands vs the f32 XLA reference.
    ref = jax.block_until_ready(_reference_forward(hp, raw, tokens))
    assert bool(jnp.allclose(out, ref, atol=2e-2, rtol=0.0)), (out, ref)

    print("KERNEL_OK")
</pallas_src>

<mosaic_0001>
module attributes {stable_mosaic.version = 11 : i64} {
  func.func @_transformer_cnn_kernel(%arg0: i32, %arg1: memref<16x1xi32, #tpu.memory_space<vmem>>, %arg2: memref<32x32xbf16, #tpu.memory_space<vmem>>, %arg3: memref<6x32x32xbf16, #tpu.memory_space<vmem>>, %arg4: memref<14x32xf32, #tpu.memory_space<vmem>>, %arg5: memref<3x8x72xbf16, #tpu.memory_space<vmem>>, %arg6: memref<3x8x1xf32, #tpu.memory_space<vmem>>, %arg7: memref<9x512xf32, #tpu.memory_space<vmem>>, %arg8: memref<36x128xf32, #tpu.memory_space<vmem>>, %arg9: memref<72x32xf32, #tpu.memory_space<vmem>>, %arg10: memref<512x128xbf16, #tpu.memory_space<vmem>>, %arg11: memref<128x32xbf16, #tpu.memory_space<vmem>>, %arg12: memref<288x32xbf16, #tpu.memory_space<vmem>>, %arg13: memref<2x32xf32, #tpu.memory_space<vmem>>, %arg14: memref<1x4xf32, #tpu.memory_space<vmem>>) attributes {dimension_semantics = [#tpu.dimension_semantics<arbitrary>], iteration_bounds = array<i64: 1>, scalar_prefetch = 0 : i64, scratch_operands = 0 : i64, tpu.core_type = #tpu.core_type<tc>, window_params = [{pipeline_mode = #tpu.pipeline_mode<synchronous>, transform_indices = @transform_0, window_bounds = array<i64: 16, 1>}, {pipeline_mode = #tpu.pipeline_mode<synchronous>, transform_indices = @transform_1, window_bounds = array<i64: 32, 32>}, {pipeline_mode = #tpu.pipeline_mode<synchronous>, transform_indices = @transform_2, window_bounds = array<i64: 6, 32, 32>}, {pipeline_mode = #tpu.pipeline_mode<synchronous>, transform_indices = @transform_3, window_bounds = array<i64: 14, 32>}, {pipeline_mode = #tpu.pipeline_mode<synchronous>, transform_indices = @transform_4, window_bounds = array<i64: 3, 8, 72>}, {pipeline_mode = #tpu.pipeline_mode<synchronous>, transform_indices = @transform_5, window_bounds = array<i64: 3, 8, 1>}, {pipeline_mode = #tpu.pipeline_mode<synchronous>, transform_indices = @transform_6, window_bounds = array<i64: 9, 512>}, {pipeline_mode = #tpu.pipeline_mode<synchronous>, transform_indices = @transform_7, window_bounds = array<i64: 36, 128>}, {pipeline_mode = #tpu.pipeline_mode<synchronous>, transform_indices = @transform_8, window_bounds = array<i64: 72, 32>}, {pipeline_mode = #tpu.pipeline_mode<synchronous>, transform_indices = @transform_9, window_bounds = array<i64: 512, 128>}, {pipeline_mode = #tpu.pipeline_mode<synchronous>, transform_indices = @transform_10, window_bounds = array<i64: 128, 32>}, {pipeline_mode = #tpu.pipeline_mode<synchronous>, transform_indices = @transform_11, window_bounds = array<i64: 288, 32>}, {pipeline_mode = #tpu.pipeline_mode<synchronous>, transform_indices = @transform_12, window_bounds = array<i64: 2, 32>}, {pipeline_mode = #tpu.pipeline_mode<synchronous>, transform_indices = @transform_13, window_bounds = array<i64: 1, 4>}]} {
    %c0 = arith.constant 0 : index
    %c0_0 = arith.constant 0 : index
    %0 = vector.load %arg1[%c0, %c0_0] : memref<16x1xi32, #tpu.memory_space<vmem>>, vector<16x1xi32>
    %1 = tpu.iota {dimensions = array<i32: 1>} : vector<16x32xi32>
    %2 = vector.broadcast %0 : vector<16x1xi32> to vector<16x32xi32>
    %3 = arith.cmpi eq, %2, %1 : vector<16x32xi32>
    %4 = arith.extui %3 : vector<16x32xi1> to vector<16x32xi32>
    %5 = arith.sitofp %4 : vector<16x32xi32> to vector<16x32xf32>
    %6 = arith.truncf %5 : vector<16x32xf32> to vector<16x32xbf16>
    %c0_1 = arith.constant 0 : index
    %c0_2 = arith.constant 0 : index
    %7 = vector.load %arg2[%c0_1, %c0_2] : memref<32x32xbf16, #tpu.memory_space<vmem>>, vector<32x32xbf16>
    %cst = arith.constant dense<0.000000e+00> : vector<16x32xf32>
    %8 = tpu.matmul %6, %7, %cst {dimension_numbers = #tpu.dot_dimension_numbers<[1], [0], [0], [1], [0, 0, 1, 1], [], []>} : vector<16x32xbf16>, vector<32x32xbf16>, vector<16x32xf32> -> vector<16x32xf32>
    %c0_3 = arith.constant 0 : index
    %c0_4 = arith.constant 0 : index
    %c0_5 = arith.constant 0 : index
    %9 = vector.load %arg3[%c0_3, %c0_4, %c0_5] : memref<6x32x32xbf16, #tpu.memory_space<vmem>>, vector<1x32x32xbf16>
    %10 = vector.shape_cast %9 : vector<1x32x32xbf16> to vector<32x32xbf16>
    %c1 = arith.constant 1 : index
    %c0_6 = arith.constant 0 : index
    %c0_7 = arith.constant 0 : index
    %11 = vector.load %arg3[%c1, %c0_6, %c0_7] : memref<6x32x32xbf16, #tpu.memory_space<vmem>>, vector<1x32x32xbf16>
    %12 = vector.shape_cast %11 : vector<1x32x32xbf16> to vector<32x32xbf16>
    %c2 = arith.constant 2 : index
    %c0_8 = arith.constant 0 : index
    %c0_9 = arith.constant 0 : index
    %13 = vector.load %arg3[%c2, %c0_8, %c0_9] : memref<6x32x32xbf16, #tpu.memory_space<vmem>>, vector<1x32x32xbf16>
    %14 = vector.shape_cast %13 : vector<1x32x32xbf16> to vector<32x32xbf16>
    %15 = arith.truncf %8 : vector<16x32xf32> to vector<16x32xbf16>
    %cst_10 = arith.constant dense<0.000000e+00> : vector<16x32xf32>
    %16 = tpu.matmul %15, %10, %cst_10 {dimension_numbers = #tpu.dot_dimension_numbers<[1], [0], [0], [1], [0, 0, 1, 1], [], []>} : vector<16x32xbf16>, vector<32x32xbf16>, vector<16x32xf32> -> vector<16x32xf32>
    %c0_11 = arith.constant 0 : index
    %c0_12 = arith.constant 0 : index
    %17 = vector.load %arg4[%c0_11, %c0_12] : memref<14x32xf32, #tpu.memory_space<vmem>>, vector<1x32xf32>
    %18 = vector.broadcast %17 : vector<1x32xf32> to vector<16x32xf32>
    %19 = arith.addf %16, %18 : vector<16x32xf32>
    %20 = arith.addf %8, %19 : vector<16x32xf32>
    %c3 = arith.constant 3 : index
    %c0_13 = arith.constant 0 : index
    %21 = vector.load %arg4[%c3, %c0_13] : memref<14x32xf32, #tpu.memory_space<vmem>>, vector<1x32xf32>
    %c4 = arith.constant 4 : index
    %c0_14 = arith.constant 0 : index
    %22 = vector.load %arg4[%c4, %c0_14] : memref<14x32xf32, #tpu.memory_space<vmem>>, vector<1x32xf32>
    %cst_15 = arith.constant dense<0.000000e+00> : vector<16xf32>
    %23 = vector.multi_reduction <add>, %20, %cst_15 [1] : vector<16x32xf32> to vector<16xf32>
    %24 = vector.shape_cast %23 : vector<16xf32> to vector<16x1xf32>
    %cst_16 = arith.constant 3.200000e+01 : f32
    %25 = vector.broadcast %cst_16 : f32 to vector<16x1xf32>
    %26 = arith.divf %24, %25 : vector<16x1xf32>
    %27 = vector.broadcast %26 : vector<16x1xf32> to vector<16x32xf32>
    %28 = arith.subf %20, %27 : vector<16x32xf32>
    %29 = arith.mulf %28, %28 : vector<16x32xf32>
    %cst_17 = arith.constant dense<0.000000e+00> : vector<16xf32>
    %30 = vector.multi_reduction <add>, %29, %cst_17 [1] : vector<16x32xf32> to vector<16xf32>
    %31 = vector.shape_cast %30 : vector<16xf32> to vector<16x1xf32>
    %cst_18 = arith.constant 3.200000e+01 : f32
    %32 = vector.broadcast %cst_18 : f32 to vector<16x1xf32>
    %33 = arith.divf %31, %32 : vector<16x1xf32>
    %cst_19 = arith.constant 9.99999974E-6 : f32
    %34 = vector.broadcast %cst_19 : f32 to vector<16x1xf32>
    %35 = arith.addf %33, %34 : vector<16x1xf32>
    %36 = math.rsqrt %35 : vector<16x1xf32>
    %37 = vector.broadcast %36 : vector<16x1xf32> to vector<16x32xf32>
    %38 = arith.mulf %28, %37 : vector<16x32xf32>
    %39 = vector.broadcast %21 : vector<1x32xf32> to vector<16x32xf32>
    %40 = arith.mulf %38, %39 : vector<16x32xf32>
    %41 = vector.broadcast %22 : vector<1x32xf32> to vector<16x32xf32>
    %42 = arith.addf %40, %41 : vector<16x32xf32>
    %43 = arith.truncf %42 : vector<16x32xf32> to vector<16x32xbf16>
    %cst_20 = arith.constant dense<0.000000e+00> : vector<16x32xf32>
    %44 = tpu.matmul %43, %12, %cst_20 {dimension_numbers = #tpu.dot_dimension_numbers<[1], [0], [0], [1], [0, 0, 1, 1], [], []>} : vector<16x32xbf16>, vector<32x32xbf16>, vector<16x32xf32> -> vector<16x32xf32>
    %c1_21 = arith.constant 1 : index
    %c0_22 = arith.constant 0 : index
    %45 = vector.load %arg4[%c1_21, %c0_22] : memref<14x32xf32, #tpu.memory_space<vmem>>, vector<1x32xf32>
    %46 = vector.broadcast %45 : vector<1x32xf32> to vector<16x32xf32>
    %47 = arith.addf %44, %46 : vector<16x32xf32>
    %cst_23 = arith.constant 0.000000e+00 : f32
    %48 = vector.broadcast %cst_23 : f32 to vector<16x32xf32>
    %49 = arith.maximumf %47, %48 : vector<16x32xf32>
    %50 = arith.truncf %49 : vector<16x32xf32> to vector<16x32xbf16>
    %cst_24 = arith.constant dense<0.000000e+00> : vector<16x32xf32>
    %51 = tpu.matmul %50, %14, %cst_24 {dimension_numbers = #tpu.dot_dimension_numbers<[1], [0], [0], [1], [0, 0, 1, 1], [], []>} : vector<16x32xbf16>, vector<32x32xbf16>, vector<16x32xf32> -> vector<16x32xf32>
    %c2_25 = arith.constant 2 : index
    %c0_26 = arith.constant 0 : index
    %52 = vector.load %arg4[%c2_25, %c0_26] : memref<14x32xf32, #tpu.memory_space<vmem>>, vector<1x32xf32>
    %53 = vector.broadcast %52 : vector<1x32xf32> to vector<16x32xf32>
    %54 = arith.addf %51, %53 : vector<16x32xf32>
    %55 = arith.addf %42, %54 : vector<16x32xf32>
    %c5 = arith.constant 5 : index
    %c0_27 = arith.constant 0 : index
    %56 = vector.load %arg4[%c5, %c0_27] : memref<14x32xf32, #tpu.memory_space<vmem>>, vector<1x32xf32>
    %c6 = arith.constant 6 : index
    %c0_28 = arith.constant 0 : index
    %57 = vector.load %arg4[%c6, %c0_28] : memref<14x32xf32, #tpu.memory_space<vmem>>, vector<1x32xf32>
    %cst_29 = arith.constant dense<0.000000e+00> : vector<16xf32>
    %58 = vector.multi_reduction <add>, %55, %cst_29 [1] : vector<16x32xf32> to vector<16xf32>
    %59 = vector.shape_cast %58 : vector<16xf32> to vector<16x1xf32>
    %cst_30 = arith.constant 3.200000e+01 : f32
    %60 = vector.broadcast %cst_30 : f32 to vector<16x1xf32>
    %61 = arith.divf %59, %60 : vector<16x1xf32>
    %62 = vector.broadcast %61 : vector<16x1xf32> to vector<16x32xf32>
    %63 = arith.subf %55, %62 : vector<16x32xf32>
    %64 = arith.mulf %63, %63 : vector<16x32xf32>
    %cst_31 = arith.constant dense<0.000000e+00> : vector<16xf32>
    %65 = vector.multi_reduction <add>, %64, %cst_31 [1] : vector<16x32xf32> to vector<16xf32>
    %66 = vector.shape_cast %65 : vector<16xf32> to vector<16x1xf32>
    %cst_32 = arith.constant 3.200000e+01 : f32
    %67 = vector.broadcast %cst_32 : f32 to vector<16x1xf32>
    %68 = arith.divf %66, %67 : vector<16x1xf32>
    %cst_33 = arith.constant 9.99999974E-6 : f32
    %69 = vector.broadcast %cst_33 : f32 to vector<16x1xf32>
    %70 = arith.addf %68, %69 : vector<16x1xf32>
    %71 = math.rsqrt %70 : vector<16x1xf32>
    %72 = vector.broadcast %71 : vector<16x1xf32> to vector<16x32xf32>
    %73 = arith.mulf %63, %72 : vector<16x32xf32>
    %74 = vector.broadcast %56 : vector<1x32xf32> to vector<16x32xf32>
    %75 = arith.mulf %73, %74 : vector<16x32xf32>
    %76 = vector.broadcast %57 : vector<1x32xf32> to vector<16x32xf32>
    %77 = arith.addf %75, %76 : vector<16x32xf32>
    %c3_34 = arith.constant 3 : index
    %c0_35 = arith.constant 0 : index
    %c0_36 = arith.constant 0 : index
    %78 = vector.load %arg3[%c3_34, %c0_35, %c0_36] : memref<6x32x32xbf16, #tpu.memory_space<vmem>>, vector<1x32x32xbf16>
    %79 = vector.shape_cast %78 : vector<1x32x32xbf16> to vector<32x32xbf16>
    %c4_37 = arith.constant 4 : index
    %c0_38 = arith.constant 0 : index
    %c0_39 = arith.constant 0 : index
    %80 = vector.load %arg3[%c4_37, %c0_38, %c0_39] : memref<6x32x32xbf16, #tpu.memory_space<vmem>>, vector<1x32x32xbf16>
    %81 = vector.shape_cast %80 : vector<1x32x32xbf16> to vector<32x32xbf16>
    %c5_40 = arith.constant 5 : index
    %c0_41 = arith.constant 0 : index
    %c0_42 = arith.constant 0 : index
    %82 = vector.load %arg3[%c5_40, %c0_41, %c0_42] : memref<6x32x32xbf16, #tpu.memory_space<vmem>>, vector<1x32x32xbf16>
    %83 = vector.shape_cast %82 : vector<1x32x32xbf16> to vector<32x32xbf16>
    %84 = arith.truncf %77 : vector<16x32xf32> to vector<16x32xbf16>
    %cst_43 = arith.constant dense<0.000000e+00> : vector<16x32xf32>
    %85 = tpu.matmul %84, %79, %cst_43 {dimension_numbers = #tpu.dot_dimension_numbers<[1], [0], [0], [1], [0, 0, 1, 1], [], []>} : vector<16x32xbf16>, vector<32x32xbf16>, vector<16x32xf32> -> vector<16x32xf32>
    %c7 = arith.constant 7 : index
    %c0_44 = arith.constant 0 : index
    %86 = vector.load %arg4[%c7, %c0_44] : memref<14x32xf32, #tpu.memory_space<vmem>>, vector<1x32xf32>
    %87 = vector.broadcast %86 : vector<1x32xf32> to vector<16x32xf32>
    %88 = arith.addf %85, %87 : vector<16x32xf32>
    %89 = arith.addf %77, %88 : vector<16x32xf32>
    %c10 = arith.constant 10 : index
    %c0_45 = arith.constant 0 : index
    %90 = vector.load %arg4[%c10, %c0_45] : memref<14x32xf32, #tpu.memory_space<vmem>>, vector<1x32xf32>
    %c11 = arith.constant 11 : index
    %c0_46 = arith.constant 0 : index
    %91 = vector.load %arg4[%c11, %c0_46] : memref<14x32xf32, #tpu.memory_space<vmem>>, vector<1x32xf32>
    %cst_47 = arith.constant dense<0.000000e+00> : vector<16xf32>
    %92 = vector.multi_reduction <add>, %89, %cst_47 [1] : vector<16x32xf32> to vector<16xf32>
    %93 = vector.shape_cast %92 : vector<16xf32> to vector<16x1xf32>
    %cst_48 = arith.constant 3.200000e+01 : f32
    %94 = vector.broadcast %cst_48 : f32 to vector<16x1xf32>
    %95 = arith.divf %93, %94 : vector<16x1xf32>
    %96 = vector.broadcast %95 : vector<16x1xf32> to vector<16x32xf32>
    %97 = arith.subf %89, %96 : vector<16x32xf32>
    %98 = arith.mulf %97, %97 : vector<16x32xf32>
    %cst_49 = arith.constant dense<0.000000e+00> : vector<16xf32>
    %99 = vector.multi_reduction <add>, %98, %cst_49 [1] : vector<16x32xf32> to vector<16xf32>
    %100 = vector.shape_cast %99 : vector<16xf32> to vector<16x1xf32>
    %cst_50 = arith.constant 3.200000e+01 : f32
    %101 = vector.broadcast %cst_50 : f32 to vector<16x1xf32>
    %102 = arith.divf %100, %101 : vector<16x1xf32>
    %cst_51 = arith.constant 9.99999974E-6 : f32
    %103 = vector.broadcast %cst_51 : f32 to vector<16x1xf32>
    %104 = arith.addf %102, %103 : vector<16x1xf32>
    %105 = math.rsqrt %104 : vector<16x1xf32>
    %106 = vector.broadcast %105 : vector<16x1xf32> to vector<16x32xf32>
    %107 = arith.mulf %97, %106 : vector<16x32xf32>
    %108 = vector.broadcast %90 : vector<1x32xf32> to vector<16x32xf32>
    %109 = arith.mulf %107, %108 : vector<16x32xf32>
    %110 = vector.broadcast %91 : vector<1x32xf32> to vector<16x32xf32>
    %111 = arith.addf %109, %110 : vector<16x32xf32>
    %112 = arith.truncf %111 : vector<16x32xf32> to vector<16x32xbf16>
    %cst_52 = arith.constant dense<0.000000e+00> : vector<16x32xf32>
    %113 = tpu.matmul %112, %81, %cst_52 {dimension_numbers = #tpu.dot_dimension_numbers<[1], [0], [0], [1], [0, 0, 1, 1], [], []>} : vector<16x32xbf16>, vector<32x32xbf16>, vector<16x32xf32> -> vector<16x32xf32>
    %c8 = arith.constant 8 : index
    %c0_53 = arith.constant 0 : index
    %114 = vector.load %arg4[%c8, %c0_53] : memref<14x32xf32, #tpu.memory_space<vmem>>, vector<1x32xf32>
    %115 = vector.broadcast %114 : vector<1x32xf32> to vector<16x32xf32>
    %116 = arith.addf %113, %115 : vector<16x32xf32>
    %cst_54 = arith.constant 0.000000e+00 : f32
    %117 = vector.broadcast %cst_54 : f32 to vector<16x32xf32>
    %118 = arith.maximumf %116, %117 : vector<16x32xf32>
    %119 = arith.truncf %118 : vector<16x32xf32> to vector<16x32xbf16>
    %cst_55 = arith.constant dense<0.000000e+00> : vector<16x32xf32>
    %120 = tpu.matmul %119, %83, %cst_55 {dimension_numbers = #tpu.dot_dimension_numbers<[1], [0], [0], [1], [0, 0, 1, 1], [], []>} : vector<16x32xbf16>, vector<32x32xbf16>, vector<16x32xf32> -> vector<16x32xf32>
    %c9 = arith.constant 9 : index
    %c0_56 = arith.constant 0 : index
    %121 = vector.load %arg4[%c9, %c0_56] : memref<14x32xf32, #tpu.memory_space<vmem>>, vector<1x32xf32>
    %122 = vector.broadcast %121 : vector<1x32xf32> to vector<16x32xf32>
    %123 = arith.addf %120, %122 : vector<16x32xf32>
    %124 = arith.addf %111, %123 : vector<16x32xf32>
    %c12 = arith.constant 12 : index
    %c0_57 = arith.constant 0 : index
    %125 = vector.load %arg4[%c12, %c0_57] : memref<14x32xf32, #tpu.memory_space<vmem>>, vector<1x32xf32>
    %c13 = arith.constant 13 : index
    %c0_58 = arith.constant 0 : index
    %126 = vector.load %arg4[%c13, %c0_58] : memref<14x32xf32, #tpu.memory_space<vmem>>, vector<1x32xf32>
    %cst_59 = arith.constant dense<0.000000e+00> : vector<16xf32>
    %127 = vector.multi_reduction <add>, %124, %cst_59 [1] : vector<16x32xf32> to vector<16xf32>
    %128 = vector.shape_cast %127 : vector<16xf32> to vector<16x1xf32>
    %cst_60 = arith.constant 3.200000e+01 : f32
    %129 = vector.broadcast %cst_60 : f32 to vector<16x1xf32>
    %130 = arith.divf %128, %129 : vector<16x1xf32>
    %131 = vector.broadcast %130 : vector<16x1xf32> to vector<16x32xf32>
    %132 = arith.subf %124, %131 : vector<16x32xf32>
    %133 = arith.mulf %132, %132 : vector<16x32xf32>
    %cst_61 = arith.constant dense<0.000000e+00> : vector<16xf32>
    %134 = vector.multi_reduction <add>, %133, %cst_61 [1] : vector<16x32xf32> to vector<16xf32>
    %135 = vector.shape_cast %134 : vector<16xf32> to vector<16x1xf32>
    %cst_62 = arith.constant 3.200000e+01 : f32
    %136 = vector.broadcast %cst_62 : f32 to vector<16x1xf32>
    %137 = arith.divf %135, %136 : vector<16x1xf32>
    %cst_63 = arith.constant 9.99999974E-6 : f32
    %138 = vector.broadcast %cst_63 : f32 to vector<16x1xf32>
    %139 = arith.addf %137, %138 : vector<16x1xf32>
    %140 = math.rsqrt %139 : vector<16x1xf32>
    %141 = vector.broadcast %140 : vector<16x1xf32> to vector<16x32xf32>
    %142 = arith.mulf %132, %141 : vector<16x32xf32>
    %143 = vector.broadcast %125 : vector<1x32xf32> to vector<16x32xf32>
    %144 = arith.mulf %142, %143 : vector<16x32xf32>
    %145 = vector.broadcast %126 : vector<1x32xf32> to vector<16x32xf32>
    %146 = arith.addf %144, %145 : vector<16x32xf32>
    %147 = vector.extract_strided_slice %146 {offsets = [0, 0], sizes = [1, 32], strides = [1, 1]} : vector<16x32xf32> to vector<1x32xf32>
    %148 = vector.extract_strided_slice %146 {offsets = [1, 0], sizes = [1, 32], strides = [1, 1]} : vector<16x32xf32> to vector<1x32xf32>
    %149 = vector.extract_strided_slice %146 {offsets = [2, 0], sizes = [1, 32], strides = [1, 1]} : vector<16x32xf32> to vector<1x32xf32>
    %150 = vector.extract_strided_slice %146 {offsets = [3, 0], sizes = [1, 32], strides = [1, 1]} : vector<16x32xf32> to vector<1x32xf32>
    %151 = vector.extract_strided_slice %146 {offsets = [4, 0], sizes = [1, 32], strides = [1, 1]} : vector<16x32xf32> to vector<1x32xf32>
    %152 = vector.extract_strided_slice %146 {offsets = [5, 0], sizes = [1, 32], strides = [1, 1]} : vector<16x32xf32> to vector<1x32xf32>
    %153 = vector.extract_strided_slice %146 {offsets = [6, 0], sizes = [1, 32], strides = [1, 1]} : vector<16x32xf32> to vector<1x32xf32>
    %154 = vector.extract_strided_slice %146 {offsets = [7, 0], sizes = [1, 32], strides = [1, 1]} : vector<16x32xf32> to vector<1x32xf32>
    %155 = vector.extract_strided_slice %146 {offsets = [8, 0], sizes = [1, 32], strides = [1, 1]} : vector<16x32xf32> to vector<1x32xf32>
    %156 = vector.extract_strided_slice %146 {offsets = [9, 0], sizes = [1, 32], strides = [1, 1]} : vector<16x32xf32> to vector<1x32xf32>
    %157 = vector.extract_strided_slice %146 {offsets = [10, 0], sizes = [1, 32], strides = [1, 1]} : vector<16x32xf32> to vector<1x32xf32>
    %158 = vector.extract_strided_slice %146 {offsets = [11, 0], sizes = [1, 32], strides = [1, 1]} : vector<16x32xf32> to vector<1x32xf32>
    %159 = vector.extract_strided_slice %146 {offsets = [12, 0], sizes = [1, 32], strides = [1, 1]} : vector<16x32xf32> to vector<1x32xf32>
    %160 = vector.extract_strided_slice %146 {offsets = [13, 0], sizes = [1, 32], strides = [1, 1]} : vector<16x32xf32> to vector<1x32xf32>
    %161 = vector.extract_strided_slice %146 {offsets = [14, 0], sizes = [1, 32], strides = [1, 1]} : vector<16x32xf32> to vector<1x32xf32>
    %162 = vector.extract_strided_slice %146 {offsets = [15, 0], sizes = [1, 32], strides = [1, 1]} : vector<16x32xf32> to vector<1x32xf32>
    %163 = tpu.concatenate %147, %148, %149, %150, %151, %152, %153, %154, %155, %156, %157, %158, %159, %160, %161, %162 in 1 : vector<1x32xf32>, vector<1x32xf32>, vector<1x32xf32>, vector<1x32xf32>, vector<1x32xf32>, vector<1x32xf32>, vector<1x32xf32>, vector<1x32xf32>, vector<1x32xf32>, vector<1x32xf32>, vector<1x32xf32>, vector<1x32xf32>, vector<1x32xf32>, vector<1x32xf32>, vector<1x32xf32>, vector<1x32xf32> -> vector<1x512xf32>
    %c0_64 = arith.constant 0 : index
    %c0_65 = arith.constant 0 : index
    %c0_66 = arith.constant 0 : index
    %164 = vector.load %arg5[%c0_64, %c0_65, %c0_66] : memref<3x8x72xbf16, #tpu.memory_space<vmem>>, vector<1x4x9xbf16>
    %165 = vector.shape_cast %164 : vector<1x4x9xbf16> to vector<4x9xbf16>
    %c0_67 = arith.constant 0 : index
    %c0_68 = arith.constant 0 : index
    %c0_69 = arith.constant 0 : index
    %166 = vector.load %arg6[%c0_67, %c0_68, %c0_69] : memref<3x8x1xf32, #tpu.memory_space<vmem>>, vector<1x4x1xf32>
    %167 = vector.shape_cast %166 : vector<1x4x1xf32> to vector<4x1xf32>
    %cst_70 = arith.constant 0.000000e+00 : f32
    %168 = vector.broadcast %cst_70 : f32 to vector<1x33xf32>
    %169 = vector.extract_strided_slice %163 {offsets = [0, 0], sizes = [1, 479], strides = [1, 1]} : vector<1x512xf32> to vector<1x479xf32>
    %170 = tpu.concatenate %168, %169 in 1 : vector<1x33xf32>, vector<1x479xf32> -> vector<1x512xf32>
    %cst_71 = arith.constant 0.000000e+00 : f32
    %171 = vector.broadcast %cst_71 : f32 to vector<1x32xf32>
    %172 = vector.extract_strided_slice %163 {offsets = [0, 0], sizes = [1, 480], strides = [1, 1]} : vector<1x512xf32> to vector<1x480xf32>
    %173 = tpu.concatenate %171, %172 in 1 : vector<1x32xf32>, vector<1x480xf32> -> vector<1x512xf32>
    %cst_72 = arith.constant 0.000000e+00 : f32
    %174 = vector.broadcast %cst_72 : f32 to vector<1x31xf32>
    %175 = vector.extract_strided_slice %163 {offsets = [0, 0], sizes = [1, 481], strides = [1, 1]} : vector<1x512xf32> to vector<1x481xf32>
    %176 = tpu.concatenate %174, %175 in 1 : vector<1x31xf32>, vector<1x481xf32> -> vector<1x512xf32>
    %cst_73 = arith.constant 0.000000e+00 : f32
    %177 = vector.broadcast %cst_73 : f32 to vector<1x1xf32>
    %178 = vector.extract_strided_slice %163 {offsets = [0, 0], sizes = [1, 511], strides = [1, 1]} : vector<1x512xf32> to vector<1x511xf32>
    %179 = tpu.concatenate %177, %178 in 1 : vector<1x1xf32>, vector<1x511xf32> -> vector<1x512xf32>
    %cst_74 = arith.constant 0.000000e+00 : f32
    %180 = vector.broadcast %cst_74 : f32 to vector<1x1xf32>
    %181 = vector.extract_strided_slice %163 {offsets = [0, 1], sizes = [1, 511], strides = [1, 1]} : vector<1x512xf32> to vector<1x511xf32>
    %182 = tpu.concatenate %181, %180 in 1 : vector<1x511xf32>, vector<1x1xf32> -> vector<1x512xf32>
    %cst_75 = arith.constant 0.000000e+00 : f32
    %183 = vector.broadcast %cst_75 : f32 to vector<1x31xf32>
    %184 = vector.extract_strided_slice %163 {offsets = [0, 31], sizes = [1, 481], strides = [1, 1]} : vector<1x512xf32> to vector<1x481xf32>
    %185 = tpu.concatenate %184, %183 in 1 : vector<1x481xf32>, vector<1x31xf32> -> vector<1x512xf32>
    %cst_76 = arith.constant 0.000000e+00 : f32
    %186 = vector.broadcast %cst_76 : f32 to vector<1x32xf32>
    %187 = vector.extract_strided_slice %163 {offsets = [0, 32], sizes = [1, 480], strides = [1, 1]} : vector<1x512xf32> to vector<1x480xf32>
    %188 = tpu.concatenate %187, %186 in 1 : vector<1x480xf32>, vector<1x32xf32> -> vector<1x512xf32>
    %cst_77 = arith.constant 0.000000e+00 : f32
    %189 = vector.broadcast %cst_77 : f32 to vector<1x33xf32>
    %190 = vector.extract_strided_slice %163 {offsets = [0, 33], sizes = [1, 479], strides = [1, 1]} : vector<1x512xf32> to vector<1x479xf32>
    %191 = tpu.concatenate %190, %189 in 1 : vector<1x479xf32>, vector<1x33xf32> -> vector<1x512xf32>
    %192 = tpu.concatenate %170, %173, %176, %179, %163, %182, %185, %188, %191 in 0 : vector<1x512xf32>, vector<1x512xf32>, vector<1x512xf32>, vector<1x512xf32>, vector<1x512xf32>, vector<1x512xf32>, vector<1x512xf32>, vector<1x512xf32>, vector<1x512xf32> -> vector<9x512xf32>
    %c0_78 = arith.constant 0 : index
    %c0_79 = arith.constant 0 : index
    %193 = vector.load %arg7[%c0_78, %c0_79] : memref<9x512xf32, #tpu.memory_space<vmem>>, vector<9x512xf32>
    %194 = arith.mulf %192, %193 : vector<9x512xf32>
    %195 = arith.truncf %194 : vector<9x512xf32> to vector<9x512xbf16>
    %cst_80 = arith.constant dense<0.000000e+00> : vector<4x512xf32>
    %196 = tpu.matmul %165, %195, %cst_80 {dimension_numbers = #tpu.dot_dimension_numbers<[1], [0], [0], [1], [0, 0, 1, 1], [], []>} : vector<4x9xbf16>, vector<9x512xbf16>, vector<4x512xf32> -> vector<4x512xf32>
    %197 = vector.broadcast %167 : vector<4x1xf32> to vector<4x512xf32>
    %198 = arith.addf %196, %197 : vector<4x512xf32>
    %cst_81 = arith.constant 0.000000e+00 : f32
    %199 = vector.broadcast %cst_81 : f32 to vector<4x512xf32>
    %200 = arith.maximumf %198, %199 : vector<4x512xf32>
    %cst_82 = arith.constant 0.000000e+00 : f32
    %201 = vector.broadcast %cst_82 : f32 to vector<4x1xf32>
    %202 = vector.extract_strided_slice %200 {offsets = [0, 1], sizes = [4, 511], strides = [1, 1]} : vector<4x512xf32> to vector<4x511xf32>
    %203 = tpu.concatenate %202, %201 in 1 : vector<4x511xf32>, vector<4x1xf32> -> vector<4x512xf32>
    %204 = arith.maximumf %200, %203 : vector<4x512xf32>
    %cst_83 = arith.constant 0.000000e+00 : f32
    %205 = vector.broadcast %cst_83 : f32 to vector<4x32xf32>
    %206 = vector.extract_strided_slice %200 {offsets = [0, 32], sizes = [4, 480], strides = [1, 1]} : vector<4x512xf32> to vector<4x480xf32>
    %207 = tpu.concatenate %206, %205 in 1 : vector<4x480xf32>, vector<4x32xf32> -> vector<4x512xf32>
    %cst_84 = arith.constant 0.000000e+00 : f32
    %208 = vector.broadcast %cst_84 : f32 to vector<4x33xf32>
    %209 = vector.extract_strided_slice %200 {offsets = [0, 33], sizes = [4, 479], strides = [1, 1]} : vector<4x512xf32> to vector<4x479xf32>
    %210 = tpu.concatenate %209, %208 in 1 : vector<4x479xf32>, vector<4x33xf32> -> vector<4x512xf32>
    %211 = arith.maximumf %207, %210 : vector<4x512xf32>
    %212 = arith.maximumf %204, %211 : vector<4x512xf32>
    %213 = arith.truncf %212 : vector<4x512xf32> to vector<4x512xbf16>
    %c0_85 = arith.constant 0 : index
    %c0_86 = arith.constant 0 : index
    %214 = vector.load %arg10[%c0_85, %c0_86] : memref<512x128xbf16, #tpu.memory_space<vmem>>, vector<512x128xbf16>
    %cst_87 = arith.constant dense<0.000000e+00> : vector<4x128xf32>
    %215 = tpu.matmul %213, %214, %cst_87 {dimension_numbers = #tpu.dot_dimension_numbers<[1], [0], [0], [1], [0, 0, 1, 1], [], []>} : vector<4x512xbf16>, vector<512x128xbf16>, vector<4x128xf32> -> vector<4x128xf32>
    %c1_88 = arith.constant 1 : index
    %c0_89 = arith.constant 0 : index
    %c0_90 = arith.constant 0 : index
    %216 = vector.load %arg5[%c1_88, %c0_89, %c0_90] : memref<3x8x72xbf16, #tpu.memory_space<vmem>>, vector<1x8x36xbf16>
    %217 = vector.shape_cast %216 : vector<1x8x36xbf16> to vector<8x36xbf16>
    %c1_91 = arith.constant 1 : index
    %c0_92 = arith.constant 0 : index
    %c0_93 = arith.constant 0 : index
    %218 = vector.load %arg6[%c1_91, %c0_92, %c0_93] : memref<3x8x1xf32, #tpu.memory_space<vmem>>, vector<1x8x1xf32>
    %219 = vector.shape_cast %218 : vector<1x8x1xf32> to vector<8x1xf32>
    %cst_94 = arith.constant 0.000000e+00 : f32
    %220 = vector.broadcast %cst_94 : f32 to vector<4x17xf32>
    %221 = vector.extract_strided_slice %215 {offsets = [0, 0], sizes = [4, 111], strides = [1, 1]} : vector<4x128xf32> to vector<4x111xf32>
    %222 = tpu.concatenate %220, %221 in 1 : vector<4x17xf32>, vector<4x111xf32> -> vector<4x128xf32>
    %cst_95 = arith.constant 0.000000e+00 : f32
    %223 = vector.broadcast %cst_95 : f32 to vector<4x16xf32>
    %224 = vector.extract_strided_slice %215 {offsets = [0, 0], sizes = [4, 112], strides = [1, 1]} : vector<4x128xf32> to vector<4x112xf32>
    %225 = tpu.concatenate %223, %224 in 1 : vector<4x16xf32>, vector<4x112xf32> -> vector<4x128xf32>
    %cst_96 = arith.constant 0.000000e+00 : f32
    %226 = vector.broadcast %cst_96 : f32 to vector<4x15xf32>
    %227 = vector.extract_strided_slice %215 {offsets = [0, 0], sizes = [4, 113], strides = [1, 1]} : vector<4x128xf32> to vector<4x113xf32>
    %228 = tpu.concatenate %226, %227 in 1 : vector<4x15xf32>, vector<4x113xf32> -> vector<4x128xf32>
    %cst_97 = arith.constant 0.000000e+00 : f32
    %229 = vector.broadcast %cst_97 : f32 to vector<4x1xf32>
    %230 = vector.extract_strided_slice %215 {offsets = [0, 0], sizes = [4, 127], strides = [1, 1]} : vector<4x128xf32> to vector<4x127xf32>
    %231 = tpu.concatenate %229, %230 in 1 : vector<4x1xf32>, vector<4x127xf32> -> vector<4x128xf32>
    %cst_98 = arith.constant 0.000000e+00 : f32
    %232 = vector.broadcast %cst_98 : f32 to vector<4x1xf32>
    %233 = vector.extract_strided_slice %215 {offsets = [0, 1], sizes = [4, 127], strides = [1, 1]} : vector<4x128xf32> to vector<4x127xf32>
    %234 = tpu.concatenate %233, %232 in 1 : vector<4x127xf32>, vector<4x1xf32> -> vector<4x128xf32>
    %cst_99 = arith.constant 0.000000e+00 : f32
    %235 = vector.broadcast %cst_99 : f32 to vector<4x15xf32>
    %236 = vector.extract_strided_slice %215 {offsets = [0, 15], sizes = [4, 113], strides = [1, 1]} : vector<4x128xf32> to vector<4x113xf32>
    %237 = tpu.concatenate %236, %235 in 1 : vector<4x113xf32>, vector<4x15xf32> -> vector<4x128xf32>
    %cst_100 = arith.constant 0.000000e+00 : f32
    %238 = vector.broadcast %cst_100 : f32 to vector<4x16xf32>
    %239 = vector.extract_strided_slice %215 {offsets = [0, 16], sizes = [4, 112], strides = [1, 1]} : vector<4x128xf32> to vector<4x112xf32>
    %240 = tpu.concatenate %239, %238 in 1 : vector<4x112xf32>, vector<4x16xf32> -> vector<4x128xf32>
    %cst_101 = arith.constant 0.000000e+00 : f32
    %241 = vector.broadcast %cst_101 : f32 to vector<4x17xf32>
    %242 = vector.extract_strided_slice %215 {offsets = [0, 17], sizes = [4, 111], strides = [1, 1]} : vector<4x128xf32> to vector<4x111xf32>
    %243 = tpu.concatenate %242, %241 in 1 : vector<4x111xf32>, vector<4x17xf32> -> vector<4x128xf32>
    %244 = tpu.concatenate %222, %225, %228, %231, %215, %234, %237, %240, %243 in 0 : vector<4x128xf32>, vector<4x128xf32>, vector<4x128xf32>, vector<4x128xf32>, vector<4x128xf32>, vector<4x128xf32>, vector<4x128xf32>, vector<4x128xf32>, vector<4x128xf32> -> vector<36x128xf32>
    %c0_102 = arith.constant 0 : index
    %c0_103 = arith.constant 0 : index
    %245 = vector.load %arg8[%c0_102, %c0_103] : memref<36x128xf32, #tpu.memory_space<vmem>>, vector<36x128xf32>
    %246 = arith.mulf %244, %245 : vector<36x128xf32>
    %247 = arith.truncf %246 : vector<36x128xf32> to vector<36x128xbf16>
    %cst_104 = arith.constant dense<0.000000e+00> : vector<8x128xf32>
    %248 = tpu.matmul %217, %247, %cst_104 {dimension_numbers = #tpu.dot_dimension_numbers<[1], [0], [0], [1], [0, 0, 1, 1], [], []>} : vector<8x36xbf16>, vector<36x128xbf16>, vector<8x128xf32> -> vector<8x128xf32>
    %249 = vector.broadcast %219 : vector<8x1xf32> to vector<8x128xf32>
    %250 = arith.addf %248, %249 : vector<8x128xf32>
    %cst_105 = arith.constant 0.000000e+00 : f32
    %251 = vector.broadcast %cst_105 : f32 to vector<8x128xf32>
    %252 = arith.maximumf %250, %251 : vector<8x128xf32>
    %cst_106 = arith.constant 0.000000e+00 : f32
    %253 = vector.broadcast %cst_106 : f32 to vector<8x1xf32>
    %254 = vector.extract_strided_slice %252 {offsets = [0, 1], sizes = [8, 127], strides = [1, 1]} : vector<8x128xf32> to vector<8x127xf32>
    %255 = tpu.concatenate %254, %253 in 1 : vector<8x127xf32>, vector<8x1xf32> -> vector<8x128xf32>
    %256 = arith.maximumf %252, %255 : vector<8x128xf32>
    %cst_107 = arith.constant 0.000000e+00 : f32
    %257 = vector.broadcast %cst_107 : f32 to vector<8x16xf32>
    %258 = vector.extract_strided_slice %252 {offsets = [0, 16], sizes = [8, 112], strides = [1, 1]} : vector<8x128xf32> to vector<8x112xf32>
    %259 = tpu.concatenate %258, %257 in 1 : vector<8x112xf32>, vector<8x16xf32> -> vector<8x128xf32>
    %cst_108 = arith.constant 0.000000e+00 : f32
    %260 = vector.broadcast %cst_108 : f32 to vector<8x17xf32>
    %261 = vector.extract_strided_slice %252 {offsets = [0, 17], sizes = [8, 111], strides = [1, 1]} : vector<8x128xf32> to vector<8x111xf32>
    %262 = tpu.concatenate %261, %260 in 1 : vector<8x111xf32>, vector<8x17xf32> -> vector<8x128xf32>
    %263 = arith.maximumf %259, %262 : vector<8x128xf32>
    %264 = arith.maximumf %256, %263 : vector<8x128xf32>
    %265 = arith.truncf %264 : vector<8x128xf32> to vector<8x128xbf16>
    %c0_109 = arith.constant 0 : index
    %c0_110 = arith.constant 0 : index
    %266 = vector.load %arg11[%c0_109, %c0_110] : memref<128x32xbf16, #tpu.memory_space<vmem>>, vector<128x32xbf16>
    %cst_111 = arith.constant dense<0.000000e+00> : vector<8x32xf32>
    %267 = tpu.matmul %265, %266, %cst_111 {dimension_numbers = #tpu.dot_dimension_numbers<[1], [0], [0], [1], [0, 0, 1, 1], [], []>} : vector<8x128xbf16>, vector<128x32xbf16>, vector<8x32xf32> -> vector<8x32xf32>
    %c2_112 = arith.constant 2 : index
    %c0_113 = arith.constant 0 : index
    %c0_114 = arith.constant 0 : index
    %268 = vector.load %arg5[%c2_112, %c0_113, %c0_114] : memref<3x8x72xbf16, #tpu.memory_space<vmem>>, vector<1x8x72xbf16>
    %269 = vector.shape_cast %268 : vector<1x8x72xbf16> to vector<8x72xbf16>
    %c2_115 = arith.constant 2 : index
    %c0_116 = arith.constant 0 : index
    %c0_117 = arith.constant 0 : index
    %270 = vector.load %arg6[%c2_115, %c0_116, %c0_117] : memref<3x8x1xf32, #tpu.memory_space<vmem>>, vector<1x8x1xf32>
    %271 = vector.shape_cast %270 : vector<1x8x1xf32> to vector<8x1xf32>
    %cst_118 = arith.constant 0.000000e+00 : f32
    %272 = vector.broadcast %cst_118 : f32 to vector<8x9xf32>
    %273 = vector.extract_strided_slice %267 {offsets = [0, 0], sizes = [8, 23], strides = [1, 1]} : vector<8x32xf32> to vector<8x23xf32>
    %274 = tpu.concatenate %272, %273 in 1 : vector<8x9xf32>, vector<8x23xf32> -> vector<8x32xf32>
    %cst_119 = arith.constant 0.000000e+00 : f32
    %275 = vector.broadcast %cst_119 : f32 to vector<8x8xf32>
    %276 = vector.extract_strided_slice %267 {offsets = [0, 0], sizes = [8, 24], strides = [1, 1]} : vector<8x32xf32> to vector<8x24xf32>
    %277 = tpu.concatenate %275, %276 in 1 : vector<8x8xf32>, vector<8x24xf32> -> vector<8x32xf32>
    %cst_120 = arith.constant 0.000000e+00 : f32
    %278 = vector.broadcast %cst_120 : f32 to vector<8x7xf32>
    %279 = vector.extract_strided_slice %267 {offsets = [0, 0], sizes = [8, 25], strides = [1, 1]} : vector<8x32xf32> to vector<8x25xf32>
    %280 = tpu.concatenate %278, %279 in 1 : vector<8x7xf32>, vector<8x25xf32> -> vector<8x32xf32>
    %cst_121 = arith.constant 0.000000e+00 : f32
    %281 = vector.broadcast %cst_121 : f32 to vector<8x1xf32>
    %282 = vector.extract_strided_slice %267 {offsets = [0, 0], sizes = [8, 31], strides = [1, 1]} : vector<8x32xf32> to vector<8x31xf32>
    %283 = tpu.concatenate %281, %282 in 1 : vector<8x1xf32>, vector<8x31xf32> -> vector<8x32xf32>
    %cst_122 = arith.constant 0.000000e+00 : f32
    %284 = vector.broadcast %cst_122 : f32 to vector<8x1xf32>
    %285 = vector.extract_strided_slice %267 {offsets = [0, 1], sizes = [8, 31], strides = [1, 1]} : vector<8x32xf32> to vector<8x31xf32>
    %286 = tpu.concatenate %285, %284 in 1 : vector<8x31xf32>, vector<8x1xf32> -> vector<8x32xf32>
    %cst_123 = arith.constant 0.000000e+00 : f32
    %287 = vector.broadcast %cst_123 : f32 to vector<8x7xf32>
    %288 = vector.extract_strided_slice %267 {offsets = [0, 7], sizes = [8, 25], strides = [1, 1]} : vector<8x32xf32> to vector<8x25xf32>
    %289 = tpu.concatenate %288, %287 in 1 : vector<8x25xf32>, vector<8x7xf32> -> vector<8x32xf32>
    %cst_124 = arith.constant 0.000000e+00 : f32
    %290 = vector.broadcast %cst_124 : f32 to vector<8x8xf32>
    %291 = vector.extract_strided_slice %267 {offsets = [0, 8], sizes = [8, 24], strides = [1, 1]} : vector<8x32xf32> to vector<8x24xf32>
    %292 = tpu.concatenate %291, %290 in 1 : vector<8x24xf32>, vector<8x8xf32> -> vector<8x32xf32>
    %cst_125 = arith.constant 0.000000e+00 : f32
    %293 = vector.broadcast %cst_125 : f32 to vector<8x9xf32>
    %294 = vector.extract_strided_slice %267 {offsets = [0, 9], sizes = [8, 23], strides = [1, 1]} : vector<8x32xf32> to vector<8x23xf32>
    %295 = tpu.concatenate %294, %293 in 1 : vector<8x23xf32>, vector<8x9xf32> -> vector<8x32xf32>
    %296 = tpu.concatenate %274, %277, %280, %283, %267, %286, %289, %292, %295 in 0 : vector<8x32xf32>, vector<8x32xf32>, vector<8x32xf32>, vector<8x32xf32>, vector<8x32xf32>, vector<8x32xf32>, vector<8x32xf32>, vector<8x32xf32>, vector<8x32xf32> -> vector<72x32xf32>
    %c0_126 = arith.constant 0 : index
    %c0_127 = arith.constant 0 : index
    %297 = vector.load %arg9[%c0_126, %c0_127] : memref<72x32xf32, #tpu.memory_space<vmem>>, vector<72x32xf32>
    %298 = arith.mulf %296, %297 : vector<72x32xf32>
    %299 = arith.truncf %298 : vector<72x32xf32> to vector<72x32xbf16>
    %cst_128 = arith.constant dense<0.000000e+00> : vector<8x32xf32>
    %300 = tpu.matmul %269, %299, %cst_128 {dimension_numbers = #tpu.dot_dimension_numbers<[1], [0], [0], [1], [0, 0, 1, 1], [], []>} : vector<8x72xbf16>, vector<72x32xbf16>, vector<8x32xf32> -> vector<8x32xf32>
    %301 = vector.broadcast %271 : vector<8x1xf32> to vector<8x32xf32>
    %302 = arith.addf %300, %301 : vector<8x32xf32>
    %cst_129 = arith.constant 0.000000e+00 : f32
    %303 = vector.broadcast %cst_129 : f32 to vector<8x32xf32>
    %304 = arith.maximumf %302, %303 : vector<8x32xf32>
    %305 = vector.extract_strided_slice %304 {offsets = [0, 0], sizes = [1, 32], strides = [1, 1]} : vector<8x32xf32> to vector<1x32xf32>
    %306 = vector.extract_strided_slice %304 {offsets = [1, 0], sizes = [1, 32], strides = [1, 1]} : vector<8x32xf32> to vector<1x32xf32>
    %307 = vector.extract_strided_slice %304 {offsets = [2, 0], sizes = [1, 32], strides = [1, 1]} : vector<8x32xf32> to vector<1x32xf32>
    %308 = vector.extract_strided_slice %304 {offsets = [3, 0], sizes = [1, 32], strides = [1, 1]} : vector<8x32xf32> to vector<1x32xf32>
    %309 = vector.extract_strided_slice %304 {offsets = [4, 0], sizes = [1, 32], strides = [1, 1]} : vector<8x32xf32> to vector<1x32xf32>
    %310 = vector.extract_strided_slice %304 {offsets = [5, 0], sizes = [1, 32], strides = [1, 1]} : vector<8x32xf32> to vector<1x32xf32>
    %311 = vector.extract_strided_slice %304 {offsets = [6, 0], sizes = [1, 32], strides = [1, 1]} : vector<8x32xf32> to vector<1x32xf32>
    %312 = vector.extract_strided_slice %304 {offsets = [7, 0], sizes = [1, 32], strides = [1, 1]} : vector<8x32xf32> to vector<1x32xf32>
    %313 = tpu.concatenate %305, %306, %307, %308, %309, %310, %311, %312 in 1 : vector<1x32xf32>, vector<1x32xf32>, vector<1x32xf32>, vector<1x32xf32>, vector<1x32xf32>, vector<1x32xf32>, vector<1x32xf32>, vector<1x32xf32> -> vector<1x256xf32>
    %314 = arith.truncf %313 : vector<1x256xf32> to vector<1x256xbf16>
    %c0_130 = arith.constant 0 : index
    %c0_131 = arith.constant 0 : index
    %315 = vector.load %arg12[%c0_130, %c0_131] : memref<288x32xbf16, #tpu.memory_space<vmem>>, vector<256x32xbf16>
    %cst_132 = arith.constant dense<0.000000e+00> : vector<1x32xf32>
    %316 = tpu.matmul %314, %315, %cst_132 {dimension_numbers = #tpu.dot_dimension_numbers<[1], [0], [0], [1], [0, 0, 1, 1], [], []>} : vector<1x256xbf16>, vector<256x32xbf16>, vector<1x32xf32> -> vector<1x32xf32>
    %c0_133 = arith.constant 0 : index
    %c0_134 = arith.constant 0 : index
    %317 = vector.load %arg13[%c0_133, %c0_134] : memref<2x32xf32, #tpu.memory_space<vmem>>, vector<1x32xf32>
    %318 = arith.addf %316, %317 : vector<1x32xf32>
    %cst_135 = arith.constant 0.000000e+00 : f32
    %319 = vector.broadcast %cst_135 : f32 to vector<1x32xf32>
    %320 = arith.maximumf %318, %319 : vector<1x32xf32>
    %321 = arith.truncf %320 : vector<1x32xf32> to vector<1x32xbf16>
    %c256 = arith.constant 256 : index
    %c0_136 = arith.constant 0 : index
    %322 = vector.load %arg12[%c256, %c0_136] : memref<288x32xbf16, #tpu.memory_space<vmem>>, vector<32x4xbf16>
    %cst_137 = arith.constant dense<0.000000e+00> : vector<1x4xf32>
    %323 = tpu.matmul %321, %322, %cst_137 {dimension_numbers = #tpu.dot_dimension_numbers<[1], [0], [0], [1], [0, 0, 1, 1], [], []>} : vector<1x32xbf16>, vector<32x4xbf16>, vector<1x4xf32> -> vector<1x4xf32>
    %c1_138 = arith.constant 1 : index
    %c0_139 = arith.constant 0 : index
    %324 = vector.load %arg13[%c1_138, %c0_139] : memref<2x32xf32, #tpu.memory_space<vmem>>, vector<1x4xf32>
    %325 = arith.addf %323, %324 : vector<1x4xf32>
    %326 = arith.negf %325 : vector<1x4xf32>
    %327 = math.exp %326 : vector<1x4xf32>
    %cst_140 = arith.constant 1.000000e+00 : f32
    %328 = vector.broadcast %cst_140 : f32 to vector<1x4xf32>
    %329 = arith.addf %328, %327 : vector<1x4xf32>
    %330 = arith.divf %328, %329 : vector<1x4xf32>
    %c0_141 = arith.constant 0 : index
    %c0_142 = arith.constant 0 : index
    %331 = vector.load %arg14[%c0_141, %c0_142] : memref<1x4xf32, #tpu.memory_space<vmem>>, vector<1x4xf32>
    tpu.vector_store %arg14[%c0_141, %c0_142], %330 {strides = array<i32>} : memref<1x4xf32, #tpu.memory_space<vmem>>, vector<1x4xf32>,
    return
  }
  func.func @transform_0(%arg0: i32) -> (i32, i32) {
    %c0_i32 = arith.constant 0 : i32
    %c0_i32_0 = arith.constant 0 : i32
    %c0_i32_1 = arith.constant 0 : i32
    return %c0_i32, %c0_i32_0 : i32, i32
  }
  func.func @transform_1(%arg0: i32) -> (i32, i32) {
    %c0_i32 = arith.constant 0 : i32
    %c0_i32_0 = arith.constant 0 : i32
    %c0_i32_1 = arith.constant 0 : i32
    return %c0_i32, %c0_i32_0 : i32, i32
  }
  func.func @transform_2(%arg0: i32) -> (i32, i32, i32) {
    %c0_i32 = arith.constant 0 : i32
    %c0_i32_0 = arith.constant 0 : i32
    %c0_i32_1 = arith.constant 0 : i32
    %c0_i32_2 = arith.constant 0 : i32
    return %c0_i32, %c0_i32_0, %c0_i32_1 : i32, i32, i32
  }
  func.func @transform_3(%arg0: i32) -> (i32, i32) {
    %c0_i32 = arith.constant 0 : i32
    %c0_i32_0 = arith.constant 0 : i32
    %c0_i32_1 = arith.constant 0 : i32
    return %c0_i32, %c0_i32_0 : i32, i32
  }
  func.func @transform_4(%arg0: i32) -> (i32, i32, i32) {
    %c0_i32 = arith.constant 0 : i32
    %c0_i32_0 = arith.constant 0 : i32
    %c0_i32_1 = arith.constant 0 : i32
    %c0_i32_2 = arith.constant 0 : i32
    return %c0_i32, %c0_i32_0, %c0_i32_1 : i32, i32, i32
  }
  func.func @transform_5(%arg0: i32) -> (i32, i32, i32) {
    %c0_i32 = arith.constant 0 : i32
    %c0_i32_0 = arith.constant 0 : i32
    %c0_i32_1 = arith.constant 0 : i32
    %c0_i32_2 = arith.constant 0 : i32
    return %c0_i32, %c0_i32_0, %c0_i32_1 : i32, i32, i32
  }
  func.func @transform_6(%arg0: i32) -> (i32, i32) {
    %c0_i32 = arith.constant 0 : i32
    %c0_i32_0 = arith.constant 0 : i32
    %c0_i32_1 = arith.constant 0 : i32
    return %c0_i32, %c0_i32_0 : i32, i32
  }
  func.func @transform_7(%arg0: i32) -> (i32, i32) {
    %c0_i32 = arith.constant 0 : i32
    %c0_i32_0 = arith.constant 0 : i32
    %c0_i32_1 = arith.constant 0 : i32
    return %c0_i32, %c0_i32_0 : i32, i32
  }
  func.func @transform_8(%arg0: i32) -> (i32, i32) {
    %c0_i32 = arith.constant 0 : i32
    %c0_i32_0 = arith.constant 0 : i32
    %c0_i32_1 = arith.constant 0 : i32
    return %c0_i32, %c0_i32_0 : i32, i32
  }
  func.func @transform_9(%arg0: i32) -> (i32, i32) {
    %c0_i32 = arith.constant 0 : i32
    %c0_i32_0 = arith.constant 0 : i32
    %c0_i32_1 = arith.constant 0 : i32
    return %c0_i32, %c0_i32_0 : i32, i32
  }
  func.func @transform_10(%arg0: i32) -> (i32, i32) {
    %c0_i32 = arith.constant 0 : i32
    %c0_i32_0 = arith.constant 0 : i32
    %c0_i32_1 = arith.constant 0 : i32
    return %c0_i32, %c0_i32_0 : i32, i32
  }
  func.func @transform_11(%arg0: i32) -> (i32, i32) {
    %c0_i32 = arith.constant 0 : i32
    %c0_i32_0 = arith.constant 0 : i32
    %c0_i32_1 = arith.constant 0 : i32
    return %c0_i32, %c0_i32_0 : i32, i32
  }
  func.func @transform_12(%arg0: i32) -> (i32, i32) {
    %c0_i32 = arith.constant 0 : i32
    %c0_i32_0 = arith.constant 0 : i32
    %c0_i32_1 = arith.constant 0 : i32
    return %c0_i32, %c0_i32_0 : i32, i32
  }
  func.func @transform_13(%arg0: i32) -> (i32, i32) {
    %c0_i32 = arith.constant 0 : i32
    %c0_i32_0 = arith.constant 0 : i32
    %c0_i32_1 = arith.constant 0 : i32
    return %c0_i32, %c0_i32_0 : i32, i32
  }
}

</mosaic_0001>

<llo_original>
// kernel: forward.1
$region0: #{forward.1}
  #allocation0 [shape = 'u32[]', space=smem, size = 0x4, offset = 0x4, fixed_abs, tag = 'smem constant byte address 0x4 - core index']
  #allocation1 [shape = 'u32[144,128]{1,0:T(1,128)}', space=vmem, size = 0x12000, scoped, tag = 'internal scratch']
  %s0 = inlined_call_operand.vmem [shape: s32[16,1], index: 0, kind: input, shape index: {}]
  %s1 = inlined_call_operand.hbm [shape: bf16[32,32], index: 1, kind: input, shape index: {}]
  %s2 = inlined_call_operand.vmem [shape: bf16[6,32,32], index: 2, kind: input, shape index: {}]
  %s3 = inlined_call_operand.hbm [shape: f32[14,32], index: 3, kind: input, shape index: {}]
  %s4 = inlined_call_operand.hbm [shape: bf16[3,8,72], index: 4, kind: input, shape index: {}]
  %s5 = inlined_call_operand.vmem [shape: f32[3,8,1], index: 5, kind: input, shape index: {}]
  %s6 = inlined_call_operand.vmem [shape: f32[9,512], index: 6, kind: input, shape index: {}]
  %s7 = inlined_call_operand.hbm [shape: f32[36,128], index: 7, kind: input, shape index: {}]
  %s8 = inlined_call_operand.vmem [shape: f32[72,32], index: 8, kind: input, shape index: {}]
  %s9 = inlined_call_operand.vmem [shape: bf16[512,128], index: 9, kind: input, shape index: {}]
  %s10 = inlined_call_operand.vmem [shape: bf16[128,32], index: 10, kind: input, shape index: {}]
  %s11 = inlined_call_operand.vmem [shape: bf16[288,32], index: 11, kind: input, shape index: {}]
  %s12 = inlined_call_operand.hbm [shape: f32[2,32], index: 12, kind: input, shape index: {}]
  %s13 = inlined_call_operand.hbm [shape: f32[1,4], index: 13, kind: output, shape index: {}]
  %s14 = sld [smem:[#allocation0]]
  $region82: #{forward.1} parent=0
    _
  %s16 = ssub.s32 1, %s14
  %s17 = scalar_select 0, %s16, %s14
  $region1: #{forward.1} parent=0
    #allocation2 [shape = 'u8[8192]{0}', space=vmem, size = 0x2000, scoped, tag = 'input window, operand 1, single buffered']
    #allocation3 [shape = 's32[1]{0}', space=sflag, size = 0x4, scoped, tag = 'scoped memory for forward.1']
    #allocation4 [shape = 's32[1]{0}', space=sflag, size = 0x4, scoped, tag = 'scoped memory for forward.1']
    #allocation5 [shape = 'u8[8192]{0}', space=vmem, size = 0x2000, scoped, tag = 'input window, operand 3, single buffered']
    #allocation6 [shape = 's32[1]{0}', space=sflag, size = 0x4, scoped, tag = 'scoped memory for forward.1']
    #allocation7 [shape = 'u8[6144]{0}', space=vmem, size = 0x1800, scoped, tag = 'input window, operand 4, single buffered']
    #allocation8 [shape = 'u8[20480]{0}', space=vmem, size = 0x5000, scoped, tag = 'input window, operand 7, single buffered']
    #allocation9 [shape = 's32[1]{0}', space=sflag, size = 0x4, scoped, tag = 'scoped memory for forward.1']
    #allocation10 [shape = 'u8[1024]{0}', space=vmem, size = 0x400, scoped, tag = 'input window, operand 12, single buffered']
    #allocation11 [shape = 'u8[512]{0}', space=vmem, size = 0x400, scoped, tag = 'output window, operand 0, single buffered']
    %18 = vsyncpa [#allocation3], 0
    %19 = vsyncpa [#allocation6], 0
    %20 = vsyncpa [#allocation9], 0
    %21 = vsyncpa [#allocation4], 0
    // Predicated region
    $region2: #{forward.1} parent=1 // pred_check
      _
    $region3: #{forward.1} parent=1 // pred_check_branch
      %23 = sbr.rel (0) target = $region5
    $region4: #{forward.1} parent=1 // pred_region
      _
    $region5: #{forward.1} parent=1 // pred_fallthru
      _
    // Predicated region
    $region6: #{forward.1} parent=1 // pred_check
      _
    $region7: #{forward.1} parent=1 // pred_check_branch
      %25 = sbr.rel (0) target = $region9
    $region8: #{forward.1} parent=1 // pred_region
      %s27 = ssub.s32 256, 256
      %28 = vsyncadd [#allocation3], %s27
      %s29 = sshll.u32 [#allocation2], 4
      %s30 = int_to_ptr.vmem [resolvable:$true] %s29
      %35 = dma.hbm_to_vmem [thread:$0]  %s1, 256, %s30, [#allocation3], 64, 64, 4
    $region9: #{forward.1} parent=1 // pred_fallthru
      _
    // Predicated region
    $region10: #{forward.1} parent=1 // pred_check
      _
    $region11: #{forward.1} parent=1 // pred_check_branch
      %37 = sbr.rel (0) target = $region13
    $region12: #{forward.1} parent=1 // pred_region
      _
    $region13: #{forward.1} parent=1 // pred_fallthru
      _
    // Predicated region
    $region14: #{forward.1} parent=1 // pred_check
      _
    $region15: #{forward.1} parent=1 // pred_check_branch
      %39 = sbr.rel (0) target = $region17
    $region16: #{forward.1} parent=1 // pred_region
      %s41 = ssub.s32 256, 256
      %42 = vsyncadd [#allocation6], %s41
      %s43 = sshll.u32 [#allocation5], 4
      %s44 = int_to_ptr.vmem [resolvable:$true] %s43
      %49 = dma.hbm_to_vmem [thread:$0]  %s3, 256, %s44, [#allocation6], 128, 128, 8
    $region17: #{forward.1} parent=1 // pred_fallthru
      _
    // Predicated region
    $region18: #{forward.1} parent=1 // pred_check
      _
    $region19: #{forward.1} parent=1 // pred_check_branch
      %51 = sbr.rel (0) target = $region21
    $region20: #{forward.1} parent=1 // pred_region
      %s53 = ssub.s32 192, 192
      %54 = vsyncadd [#allocation6], %s53
      %s55 = sshll.u32 [#allocation7], 4
      %s56 = int_to_ptr.vmem [resolvable:$true] %s55
      %61 = dma.hbm_to_vmem [thread:$0]  %s4, 192, %s56, [#allocation6], 64, 64, 4
    $region21: #{forward.1} parent=1 // pred_fallthru
      _
    // Predicated region
    $region22: #{forward.1} parent=1 // pred_check
      _
    $region23: #{forward.1} parent=1 // pred_check_branch
      %63 = sbr.rel (0) target = $region25
    $region24: #{forward.1} parent=1 // pred_region
      _
    $region25: #{forward.1} parent=1 // pred_fallthru
      _
    // Predicated region
    $region26: #{forward.1} parent=1 // pred_check
      _
    $region27: #{forward.1} parent=1 // pred_check_branch
      %65 = sbr.rel (0) target = $region29
    $region28: #{forward.1} parent=1 // pred_region
      _
    $region29: #{forward.1} parent=1 // pred_fallthru
      _
    // Predicated region
    $region30: #{forward.1} parent=1 // pred_check
      _
    $region31: #{forward.1} parent=1 // pred_check_branch
      %67 = sbr.rel (0) target = $region33
    $region32: #{forward.1} parent=1 // pred_region
      %s69 = ssub.s32 640, 640
      %70 = vsyncadd [#allocation9], %s69
      %s71 = sshll.u32 [#allocation8], 4
      %s72 = int_to_ptr.vmem [resolvable:$true] %s71
      %77 = dma.hbm_to_vmem [thread:$0]  %s7, 640, %s72, [#allocation9], 128, 128, 8
    $region33: #{forward.1} parent=1 // pred_fallthru
      _
    // Predicated region
    $region34: #{forward.1} parent=1 // pred_check
      _
    $region35: #{forward.1} parent=1 // pred_check_branch
      %79 = sbr.rel (0) target = $region37
    $region36: #{forward.1} parent=1 // pred_region
      _
    $region37: #{forward.1} parent=1 // pred_fallthru
      _
    // Predicated region
    $region38: #{forward.1} parent=1 // pred_check
      _
    $region39: #{forward.1} parent=1 // pred_check_branch
      %81 = sbr.rel (0) target = $region41
    $region40: #{forward.1} parent=1 // pred_region
      _
    $region41: #{forward.1} parent=1 // pred_fallthru
      _
    // Predicated region
    $region42: #{forward.1} parent=1 // pred_check
      _
    $region43: #{forward.1} parent=1 // pred_check_branch
      %83 = sbr.rel (0) target = $region45
    $region44: #{forward.1} parent=1 // pred_region
      _
    $region45: #{forward.1} parent=1 // pred_fallthru
      _
    // Predicated region
    $region46: #{forward.1} parent=1 // pred_check
      _
    $region47: #{forward.1} parent=1 // pred_check_branch
      %85 = sbr.rel (0) target = $region49
    $region48: #{forward.1} parent=1 // pred_region
      _
    $region49: #{forward.1} parent=1 // pred_fallthru
      _
    // Predicated region
    $region50: #{forward.1} parent=1 // pred_check
      _
    $region51: #{forward.1} parent=1 // pred_check_branch
      %87 = sbr.rel (0) target = $region53
    $region52: #{forward.1} parent=1 // pred_region
      %s89 = ssub.s32 32, 32
      %90 = vsyncadd [#allocation9], %s89
      %s92 = sshll.u32 [#allocation10], 4
      %s93 = int_to_ptr.vmem [resolvable:$true] %s92
      %95 = dma.hbm_to_vmem [thread:$0]  %s12, 32, %s93, [#allocation9]
    $region53: #{forward.1} parent=1 // pred_fallthru
      _
    // Predicated region
    $region54: #{forward.1} parent=1 // pred_check
      _
    $region55: #{forward.1} parent=1 // pred_check_branch
      %97 = sbr.rel (0) target = $region57
    $region56: #{forward.1} parent=1 // pred_region
      %98 = dma.done [#allocation3], 256
    $region57: #{forward.1} parent=1 // pred_fallthru
      _
    // Predicated region
    $region58: #{forward.1} parent=1 // pred_check
      _
    $region59: #{forward.1} parent=1 // pred_check_branch
      %100 = sbr.rel (0) target = $region61
    $region60: #{forward.1} parent=1 // pred_region
      %101 = dma.done [#allocation6], 256
    $region61: #{forward.1} parent=1 // pred_fallthru
      _
    // Predicated region
    $region62: #{forward.1} parent=1 // pred_check
      _
    $region63: #{forward.1} parent=1 // pred_check_branch
      %103 = sbr.rel (0) target = $region65
    $region64: #{forward.1} parent=1 // pred_region
      %104 = dma.done [#allocation6], 192
    $region65: #{forward.1} parent=1 // pred_fallthru
      _
    // Predicated region
    $region66: #{forward.1} parent=1 // pred_check
      _
    $region67: #{forward.1} parent=1 // pred_check_branch
      %106 = sbr.rel (0) target = $region69
    $region68: #{forward.1} parent=1 // pred_region
      %107 = dma.done [#allocation9], 640
    $region69: #{forward.1} parent=1 // pred_fallthru
      _
    // Predicated region
    $region70: #{forward.1} parent=1 // pred_check
      _
    $region71: #{forward.1} parent=1 // pred_check_branch
      %109 = sbr.rel (0) target = $region73
    $region72: #{forward.1} parent=1 // pred_region
      %110 = dma.done [#allocation9], 32
    $region73: #{forward.1} parent=1 // pred_fallthru
      _
    %v112 = vld [vmem:[%s0] sm:$0xff]
    %v113 = vld [vmem:[%s0 + $0x8] sm:$0xff]
    %v114 = vlaneseq
    %v115 = vand.u32 %v114, 127
    %116 = vset.pattern.permute.xlu0 0
    %117 = vperm.xlu0 %116, %v112
    %v118 = vpop.permute.xlu0 %117
    %119 = vset.pattern.permute.xlu0 0
    %120 = vperm.xlu0 %119, %v113
    %v121 = vpop.permute.xlu0 %120
    %vm122 = vcmp.eq.s32.totalorder %v118, %v115
    %vm123 = vcmp.eq.s32.totalorder %v121, %v115
    %v124 = vsel %vm122, 1, 0
    %v125 = vsel %vm123, 1, 0
    %v126 = vcvt.s32.f32 %v124
    %v127 = vcvt.s32.f32 %v125
    %v128 = vpack.c.bf16 %v127, %v126
    %v129 = vld [vmem:[#allocation2] sm:$0xf]
    %v130 = vld [vmem:[#allocation2 + $0x4] sm:$0xf]
    %v131 = vld [vmem:[#allocation2 + $0x8] sm:$0xf]
    %v132 = vld [vmem:[#allocation2 + $0xc] sm:$0xf]
    %v137 = vunpack.c.l.b16 %v129
    %v138 = vunpack.c.l.b16 %v130
    %v139 = vunpack.c.l.b16 %v131
    %v140 = vunpack.c.l.b16 %v132
    %v141 = vpack.c.b16 %v138, %v137
    %v142 = vpack.c.b16 %v140, %v139
    %vm145 = vcmask 261120
    %v147 = vsel %vm145, %v128, 0
    %149 = vmatprep.subr.bf16.mxu0 0
    %150 = vmatpush1.bf16.msra.mxu0 0
    %151 = vmatprep.subr.bf16.mxu0 0
    %152 = vmatpush1.bf16.msra.mxu0 0
    %153 = vmatprep.subr.bf16.mxu0 0
    %154 = vmatpush1.bf16.msra.mxu0 0
    %155 = vmatprep.subr.bf16.mxu0 0
    %156 = vmatpush1.bf16.msra.mxu0 0
    %157 = vmatprep.subr.bf16.mxu0 0
    %158 = vmatpush1.bf16.msra.mxu0 0
    %159 = vmatprep.subr.bf16.mxu0 0
    %160 = vmatpush1.bf16.msra.mxu0 0
    %161 = vmatprep.subr.bf16.mxu0 0
    %162 = vmatpush1.bf16.msra.mxu0 %v142
    %163 = vmatprep.subr.bf16.mxu0 0
    %164 = vmatpush1.bf16.msra.mxu0 %v141
    %165 = vmatprep.subr.bf16.mxu0 0
    %166 = vmatpush2.bf16.msra.mxu0 0
    %167 = vmatprep.subr.bf16.mxu0 0
    %168 = vmatpush2.bf16.msra.mxu0 0
    %169 = vmatprep.subr.bf16.mxu0 0
    %170 = vmatpush2.bf16.msra.mxu0 0
    %171 = vmatprep.subr.bf16.mxu0 0
    %172 = vmatpush2.bf16.msra.mxu0 0
    %173 = vmatprep.subr.bf16.mxu0 0
    %174 = vmatpush2.bf16.msra.mxu0 0
    %175 = vmatprep.subr.bf16.mxu0 0
    %176 = vmatpush2.bf16.msra.mxu0 0
    %177 = vmatprep.subr.bf16.mxu0 0
    %178 = vmatpush2.bf16.msra.mxu0 0
    %179 = vmatprep.subr.bf16.mxu0 0
    %180 = vmatpush2.bf16.msra.mxu0 0
    %181 = vmatprep.mubr.bf16.mxu0 0
    %182 = vmatmul.mubr.bf16.gmra.mxu0 %v147
    %v183 = vpop.f32.mrf.mxu0
    %v184 = vadd.f32 0.0, %v183
    %v185 = vpop.f32.mrf.mxu0
    %v186 = vpop.f32.mrf.mxu0
    %v187 = vadd.f32 0.0, %v186
    %v188 = vpop.f32.mrf.mxu0
    %189 = vdwg.mxu0
    %v190 = vld [vmem:[%s2] sm:$0xf]
    %v191 = vld [vmem:[%s2 + $0x4] sm:$0xf]
    %v192 = vld [vmem:[%s2 + $0x8] sm:$0xf]
    %v193 = vld [vmem:[%s2 + $0xc] sm:$0xf]
    %s194 = scalar_lea.vmem %s2, 16
    %v195 = vld [vmem:[%s194] sm:$0xf]
    %v196 = vld [vmem:[%s194 + $0x4] sm:$0xf]
    %v197 = vld [vmem:[%s194 + $0x8] sm:$0xf]
    %v198 = vld [vmem:[%s194 + $0xc] sm:$0xf]
    %s199 = scalar_lea.vmem %s2, 32
    %v200 = vld [vmem:[%s199] sm:$0xf]
    %v201 = vld [vmem:[%s199 + $0x4] sm:$0xf]
    %v202 = vld [vmem:[%s199 + $0x8] sm:$0xf]
    %v203 = vld [vmem:[%s199 + $0xc] sm:$0xf]
    %v204 = vpack.c.bf16 %v187, %v184
    %v205 = vld [vmem:[#allocation5] sm:$0x1]
    %v206 = vlaneseq
    %v207 = vshrl.u32 %v206, 7
    %v208 = vsub.s32 0, %v207
    %v209 = vrot.slane %v205, %v208
    %v214 = vunpack.c.l.b16 %v190
    %v215 = vunpack.c.l.b16 %v191
    %v216 = vunpack.c.l.b16 %v192
    %v217 = vunpack.c.l.b16 %v193
    %v218 = vpack.c.b16 %v215, %v214
    %v219 = vpack.c.b16 %v217, %v216
    %v223 = vsel %vm145, %v204, 0
    %225 = vmatprep.subr.bf16.mxu0 0
    %226 = vmatpush1.bf16.msra.mxu0 0
    %227 = vmatprep.subr.bf16.mxu0 0
    %228 = vmatpush1.bf16.msra.mxu0 0
    %229 = vmatprep.subr.bf16.mxu0 0
    %230 = vmatpush1.bf16.msra.mxu0 0
    %231 = vmatprep.subr.bf16.mxu0 0
    %232 = vmatpush1.bf16.msra.mxu0 0
    %233 = vmatprep.subr.bf16.mxu0 0
    %234 = vmatpush1.bf16.msra.mxu0 0
    %235 = vmatprep.subr.bf16.mxu0 0
    %236 = vmatpush1.bf16.msra.mxu0 0
    %237 = vmatprep.subr.bf16.mxu0 0
    %238 = vmatpush1.bf16.msra.mxu0 %v219
    %239 = vmatprep.subr.bf16.mxu0 0
    %240 = vmatpush1.bf16.msra.mxu0 %v218
    %241 = vmatprep.subr.bf16.mxu0 0
    %242 = vmatpush2.bf16.msra.mxu0 0
    %243 = vmatprep.subr.bf16.mxu0 0
    %244 = vmatpush2.bf16.msra.mxu0 0
    %245 = vmatprep.subr.bf16.mxu0 0
    %246 = vmatpush2.bf16.msra.mxu0 0
    %247 = vmatprep.subr.bf16.mxu0 0
    %248 = vmatpush2.bf16.msra.mxu0 0
    %249 = vmatprep.subr.bf16.mxu0 0
    %250 = vmatpush2.bf16.msra.mxu0 0
    %251 = vmatprep.subr.bf16.mxu0 0
    %252 = vmatpush2.bf16.msra.mxu0 0
    %253 = vmatprep.subr.bf16.mxu0 0
    %254 = vmatpush2.bf16.msra.mxu0 0
    %255 = vmatprep.subr.bf16.mxu0 0
    %256 = vmatpush2.bf16.msra.mxu0 0
    %257 = vmatprep.mubr.bf16.mxu0 0
    %258 = vmatmul.mubr.bf16.gmra.mxu0 %v223
    %v259 = vpop.f32.mrf.mxu0
    %v260 = vadd.f32 %v209, %v259
    %v261 = vpop.f32.mrf.mxu0
    %v262 = vpop.f32.mrf.mxu0
    %v263 = vadd.f32 %v209, %v262
    %v264 = vpop.f32.mrf.mxu0
    %265 = vdwg.mxu0
    %v266 = vadd.f32 %v184, %v260
    %v267 = vadd.f32 %v187, %v263
    %v268 = vld [vmem:[#allocation5 + $0x3] sm:$0x1]
    %v269 = vld [vmem:[#allocation5 + $0x4] sm:$0x1]
    %v270 = vsel %vm145, %v266, 0.0
    %271 = vadd.xlane.f32.xlu0 %v270
    %v272 = vpop.xlane.xlu0 %271
    %v273 = vsel %vm145, %v267, 0.0
    %274 = vadd.xlane.f32.xlu0 %v273
    %v275 = vpop.xlane.xlu0 %274
    %v276 = vrcp.pop 32.0
    %v277 = vmul.f32 %v272, %v276
    %v278 = vmul.f32 %v275, %v276
    %v279 = vsub.f32 %v266, %v277
    %v280 = vsub.f32 %v267, %v278
    %v281 = vmul.f32 %v279, %v279
    %v282 = vmul.f32 %v280, %v280
    %v283 = vsel %vm145, %v281, 0.0
    %284 = vadd.xlane.f32.xlu0 %v283
    %v285 = vpop.xlane.xlu0 %284
    %v286 = vsel %vm145, %v282, 0.0
    %287 = vadd.xlane.f32.xlu0 %v286
    %v288 = vpop.xlane.xlu0 %287
    %v289 = vmul.f32 %v285, %v276
    %v290 = vmul.f32 %v288, %v276
    %v291 = vadd.f32 %v289, 1e-05
    %v292 = vadd.f32 %v290, 1e-05
    %v293 = vrsqrt.pop %v291
    %v294 = vrsqrt.pop %v292
    %v295 = vmul.f32 %v279, %v293
    %v296 = vmul.f32 %v280, %v294
    %v297 = vlaneseq
    %v298 = vshrl.u32 %v297, 7
    %v299 = vsub.s32 0, %v298
    %v300 = vrot.slane %v268, %v299
    %v301 = vmul.f32 %v295, %v300
    %v302 = vmul.f32 %v296, %v300
    %v303 = vlaneseq
    %v304 = vshrl.u32 %v303, 7
    %v305 = vsub.s32 0, %v304
    %v306 = vrot.slane %v269, %v305
    %v307 = vadd.f32 %v301, %v306
    %v308 = vadd.f32 %v302, %v306
    %v309 = vpack.c.bf16 %v308, %v307
    %v310 = vld [vmem:[#allocation5 + $0x1] sm:$0x1]
    %v311 = vlaneseq
    %v312 = vshrl.u32 %v311, 7
    %v313 = vsub.s32 0, %v312
    %v314 = vrot.slane %v310, %v313
    %v319 = vunpack.c.l.b16 %v195
    %v320 = vunpack.c.l.b16 %v196
    %v321 = vunpack.c.l.b16 %v197
    %v322 = vunpack.c.l.b16 %v198
    %v323 = vpack.c.b16 %v320, %v319
    %v324 = vpack.c.b16 %v322, %v321
    %v328 = vsel %vm145, %v309, 0
    %330 = vmatprep.subr.bf16.mxu0 0
    %331 = vmatpush1.bf16.msra.mxu0 0
    %332 = vmatprep.subr.bf16.mxu0 0
    %333 = vmatpush1.bf16.msra.mxu0 0
    %334 = vmatprep.subr.bf16.mxu0 0
    %335 = vmatpush1.bf16.msra.mxu0 0
    %336 = vmatprep.subr.bf16.mxu0 0
    %337 = vmatpush1.bf16.msra.mxu0 0
    %338 = vmatprep.subr.bf16.mxu0 0
    %339 = vmatpush1.bf16.msra.mxu0 0
    %340 = vmatprep.subr.bf16.mxu0 0
    %341 = vmatpush1.bf16.msra.mxu0 0
    %342 = vmatprep.subr.bf16.mxu0 0
    %343 = vmatpush1.bf16.msra.mxu0 %v324
    %344 = vmatprep.subr.bf16.mxu0 0
    %345 = vmatpush1.bf16.msra.mxu0 %v323
    %346 = vmatprep.subr.bf16.mxu0 0
    %347 = vmatpush2.bf16.msra.mxu0 0
    %348 = vmatprep.subr.bf16.mxu0 0
    %349 = vmatpush2.bf16.msra.mxu0 0
    %350 = vmatprep.subr.bf16.mxu0 0
    %351 = vmatpush2.bf16.msra.mxu0 0
    %352 = vmatprep.subr.bf16.mxu0 0
    %353 = vmatpush2.bf16.msra.mxu0 0
    %354 = vmatprep.subr.bf16.mxu0 0
    %355 = vmatpush2.bf16.msra.mxu0 0
    %356 = vmatprep.subr.bf16.mxu0 0
    %357 = vmatpush2.bf16.msra.mxu0 0
    %358 = vmatprep.subr.bf16.mxu0 0
    %359 = vmatpush2.bf16.msra.mxu0 0
    %360 = vmatprep.subr.bf16.mxu0 0
    %361 = vmatpush2.bf16.msra.mxu0 0
    %362 = vmatprep.mubr.bf16.mxu0 0
    %363 = vmatmul.mubr.bf16.gmra.mxu0 %v328
    %v364 = vpop.f32.mrf.mxu0
    %v365 = vadd.f32 %v314, %v364
    %v366 = vpop.f32.mrf.mxu0
    %v367 = vpop.f32.mrf.mxu0
    %v368 = vadd.f32 %v314, %v367
    %v369 = vpop.f32.mrf.mxu0
    %370 = vdwg.mxu0
    %v371 = vmax.f32 %v365, 0.0
    %v372 = vmax.f32 %v368, 0.0
    %v373 = vpack.c.bf16 %v372, %v371
    %v374 = vld [vmem:[#allocation5 + $0x2] sm:$0x1]
    %v375 = vlaneseq
    %v376 = vshrl.u32 %v375, 7
    %v377 = vsub.s32 0, %v376
    %v378 = vrot.slane %v374, %v377
    %v383 = vunpack.c.l.b16 %v200
    %v384 = vunpack.c.l.b16 %v201
    %v385 = vunpack.c.l.b16 %v202
    %v386 = vunpack.c.l.b16 %v203
    %v387 = vpack.c.b16 %v384, %v383
    %v388 = vpack.c.b16 %v386, %v385
    %v392 = vsel %vm145, %v373, 0
    %394 = vmatprep.subr.bf16.mxu0 0
    %395 = vmatpush1.bf16.msra.mxu0 0
    %396 = vmatprep.subr.bf16.mxu0 0
    %397 = vmatpush1.bf16.msra.mxu0 0
    %398 = vmatprep.subr.bf16.mxu0 0
    %399 = vmatpush1.bf16.msra.mxu0 0
    %400 = vmatprep.subr.bf16.mxu0 0
    %401 = vmatpush1.bf16.msra.mxu0 0
    %402 = vmatprep.subr.bf16.mxu0 0
    %403 = vmatpush1.bf16.msra.mxu0 0
    %404 = vmatprep.subr.bf16.mxu0 0
    %405 = vmatpush1.bf16.msra.mxu0 0
    %406 = vmatprep.subr.bf16.mxu0 0
    %407 = vmatpush1.bf16.msra.mxu0 %v388
    %408 = vmatprep.subr.bf16.mxu0 0
    %409 = vmatpush1.bf16.msra.mxu0 %v387
    %410 = vmatprep.subr.bf16.mxu0 0
    %411 = vmatpush2.bf16.msra.mxu0 0
    %412 = vmatprep.subr.bf16.mxu0 0
    %413 = vmatpush2.bf16.msra.mxu0 0
    %414 = vmatprep.subr.bf16.mxu0 0
    %415 = vmatpush2.bf16.msra.mxu0 0
    %416 = vmatprep.subr.bf16.mxu0 0
    %417 = vmatpush2.bf16.msra.mxu0 0
    %418 = vmatprep.subr.bf16.mxu0 0
    %419 = vmatpush2.bf16.msra.mxu0 0
    %420 = vmatprep.subr.bf16.mxu0 0
    %421 = vmatpush2.bf16.msra.mxu0 0
    %422 = vmatprep.subr.bf16.mxu0 0
    %423 = vmatpush2.bf16.msra.mxu0 0
    %424 = vmatprep.subr.bf16.mxu0 0
    %425 = vmatpush2.bf16.msra.mxu0 0
    %426 = vmatprep.mubr.bf16.mxu0 0
    %427 = vmatmul.mubr.bf16.gmra.mxu0 %v392
    %v428 = vpop.f32.mrf.mxu0
    %v429 = vadd.f32 %v378, %v428
    %v430 = vpop.f32.mrf.mxu0
    %v431 = vpop.f32.mrf.mxu0
    %v432 = vadd.f32 %v378, %v431
    %v433 = vpop.f32.mrf.mxu0
    %434 = vdwg.mxu0
    %v435 = vadd.f32 %v307, %v429
    %v436 = vadd.f32 %v308, %v432
    %v437 = vld [vmem:[#allocation5 + $0x5] sm:$0x1]
    %v438 = vld [vmem:[#allocation5 + $0x6] sm:$0x1]
    %v439 = vsel %vm145, %v435, 0.0
    %440 = vadd.xlane.f32.xlu0 %v439
    %v441 = vpop.xlane.xlu0 %440
    %v442 = vsel %vm145, %v436, 0.0
    %443 = vadd.xlane.f32.xlu0 %v442
    %v444 = vpop.xlane.xlu0 %443
    %v445 = vmul.f32 %v441, %v276
    %v446 = vmul.f32 %v444, %v276
    %v447 = vsub.f32 %v435, %v445
    %v448 = vsub.f32 %v436, %v446
    %v449 = vmul.f32 %v447, %v447
    %v450 = vmul.f32 %v448, %v448
    %v451 = vsel %vm145, %v449, 0.0
    %452 = vadd.xlane.f32.xlu0 %v451
    %v453 = vpop.xlane.xlu0 %452
    %v454 = vsel %vm145, %v450, 0.0
    %455 = vadd.xlane.f32.xlu0 %v454
    %v456 = vpop.xlane.xlu0 %455
    %v457 = vmul.f32 %v453, %v276
    %v458 = vmul.f32 %v456, %v276
    %v459 = vadd.f32 %v457, 1e-05
    %v460 = vadd.f32 %v458, 1e-05
    %v461 = vrsqrt.pop %v459
    %v462 = vrsqrt.pop %v460
    %v463 = vmul.f32 %v447, %v461
    %v464 = vmul.f32 %v448, %v462
    %v465 = vlaneseq
    %v466 = vshrl.u32 %v465, 7
    %v467 = vsub.s32 0, %v466
    %v468 = vrot.slane %v437, %v467
    %v469 = vmul.f32 %v463, %v468
    %v470 = vmul.f32 %v464, %v468
    %v471 = vlaneseq
    %v472 = vshrl.u32 %v471, 7
    %v473 = vsub.s32 0, %v472
    %v474 = vrot.slane %v438, %v473
    %v475 = vadd.f32 %v469, %v474
    %v476 = vadd.f32 %v470, %v474
    %s477 = scalar_lea.vmem %s2, 48
    %v478 = vld [vmem:[%s477] sm:$0xf]
    %v479 = vld [vmem:[%s477 + $0x4] sm:$0xf]
    %v480 = vld [vmem:[%s477 + $0x8] sm:$0xf]
    %v481 = vld [vmem:[%s477 + $0xc] sm:$0xf]
    %s482 = scalar_lea.vmem %s2, 64
    %v483 = vld [vmem:[%s482] sm:$0xf]
    %v484 = vld [vmem:[%s482 + $0x4] sm:$0xf]
    %v485 = vld [vmem:[%s482 + $0x8] sm:$0xf]
    %v486 = vld [vmem:[%s482 + $0xc] sm:$0xf]
    %s487 = scalar_lea.vmem %s2, 80
    %v488 = vld [vmem:[%s487] sm:$0xf]
    %v489 = vld [vmem:[%s487 + $0x4] sm:$0xf]
    %v490 = vld [vmem:[%s487 + $0x8] sm:$0xf]
    %v491 = vld [vmem:[%s487 + $0xc] sm:$0xf]
    %v492 = vpack.c.bf16 %v476, %v475
    %v493 = vld [vmem:[#allocation5 + $0x7] sm:$0x1]
    %v494 = vlaneseq
    %v495 = vshrl.u32 %v494, 7
    %v496 = vsub.s32 0, %v495
    %v497 = vrot.slane %v493, %v496
    %v502 = vunpack.c.l.b16 %v478
    %v503 = vunpack.c.l.b16 %v479
    %v504 = vunpack.c.l.b16 %v480
    %v505 = vunpack.c.l.b16 %v481
    %v506 = vpack.c.b16 %v503, %v502
    %v507 = vpack.c.b16 %v505, %v504
    %v511 = vsel %vm145, %v492, 0
    %513 = vmatprep.subr.bf16.mxu0 0
    %514 = vmatpush1.bf16.msra.mxu0 0
    %515 = vmatprep.subr.bf16.mxu0 0
    %516 = vmatpush1.bf16.msra.mxu0 0
    %517 = vmatprep.subr.bf16.mxu0 0
    %518 = vmatpush1.bf16.msra.mxu0 0
    %519 = vmatprep.subr.bf16.mxu0 0
    %520 = vmatpush1.bf16.msra.mxu0 0
    %521 = vmatprep.subr.bf16.mxu0 0
    %522 = vmatpush1.bf16.msra.mxu0 0
    %523 = vmatprep.subr.bf16.mxu0 0
    %524 = vmatpush1.bf16.msra.mxu0 0
    %525 = vmatprep.subr.bf16.mxu0 0
    %526 = vmatpush1.bf16.msra.mxu0 %v507
    %527 = vmatprep.subr.bf16.mxu0 0
    %528 = vmatpush1.bf16.msra.mxu0 %v506
    %529 = vmatprep.subr.bf16.mxu0 0
    %530 = vmatpush2.bf16.msra.mxu0 0
    %531 = vmatprep.subr.bf16.mxu0 0
    %532 = vmatpush2.bf16.msra.mxu0 0
    %533 = vmatprep.subr.bf16.mxu0 0
    %534 = vmatpush2.bf16.msra.mxu0 0
    %535 = vmatprep.subr.bf16.mxu0 0
    %536 = vmatpush2.bf16.msra.mxu0 0
    %537 = vmatprep.subr.bf16.mxu0 0
    %538 = vmatpush2.bf16.msra.mxu0 0
    %539 = vmatprep.subr.bf16.mxu0 0
    %540 = vmatpush2.bf16.msra.mxu0 0
    %541 = vmatprep.subr.bf16.mxu0 0
    %542 = vmatpush2.bf16.msra.mxu0 0
    %543 = vmatprep.subr.bf16.mxu0 0
    %544 = vmatpush2.bf16.msra.mxu0 0
    %545 = vmatprep.mubr.bf16.mxu0 0
    %546 = vmatmul.mubr.bf16.gmra.mxu0 %v511
    %v547 = vpop.f32.mrf.mxu0
    %v548 = vadd.f32 %v497, %v547
    %v549 = vpop.f32.mrf.mxu0
    %v550 = vpop.f32.mrf.mxu0
    %v551 = vadd.f32 %v497, %v550
    %v552 = vpop.f32.mrf.mxu0
    %553 = vdwg.mxu0
    %v554 = vadd.f32 %v475, %v548
    %v555 = vadd.f32 %v476, %v551
    %v556 = vld [vmem:[#allocation5 + $0xa] sm:$0x1]
    %v557 = vld [vmem:[#allocation5 + $0xb] sm:$0x1]
    %v558 = vsel %vm145, %v554, 0.0
    %559 = vadd.xlane.f32.xlu0 %v558
    %v560 = vpop.xlane.xlu0 %559
    %v561 = vsel %vm145, %v555, 0.0
    %562 = vadd.xlane.f32.xlu0 %v561
    %v563 = vpop.xlane.xlu0 %562
    %v564 = vmul.f32 %v560, %v276
    %v565 = vmul.f32 %v563, %v276
    %v566 = vsub.f32 %v554, %v564
    %v567 = vsub.f32 %v555, %v565
    %v568 = vmul.f32 %v566, %v566
    %v569 = vmul.f32 %v567, %v567
    %v570 = vsel %vm145, %v568, 0.0
    %571 = vadd.xlane.f32.xlu0 %v570
    %v572 = vpop.xlane.xlu0 %571
    %v573 = vsel %vm145, %v569, 0.0
    %574 = vadd.xlane.f32.xlu0 %v573
    %v575 = vpop.xlane.xlu0 %574
    %v576 = vmul.f32 %v572, %v276
    %v577 = vmul.f32 %v575, %v276
    %v578 = vadd.f32 %v576, 1e-05
    %v579 = vadd.f32 %v577, 1e-05
    %v580 = vrsqrt.pop %v578
    %v581 = vrsqrt.pop %v579
    %v582 = vmul.f32 %v566, %v580
    %v583 = vmul.f32 %v567, %v581
    %v584 = vlaneseq
    %v585 = vshrl.u32 %v584, 7
    %v586 = vsub.s32 0, %v585
    %v587 = vrot.slane %v556, %v586
    %v588 = vmul.f32 %v582, %v587
    %v589 = vmul.f32 %v583, %v587
    %v590 = vlaneseq
    %v591 = vshrl.u32 %v590, 7
    %v592 = vsub.s32 0, %v591
    %v593 = vrot.slane %v557, %v592
    %v594 = vadd.f32 %v588, %v593
    %v595 = vadd.f32 %v589, %v593
    %v596 = vpack.c.bf16 %v595, %v594
    %v597 = vld [vmem:[#allocation5 + $0x8] sm:$0x1]
    %v598 = vlaneseq
    %v599 = vshrl.u32 %v598, 7
    %v600 = vsub.s32 0, %v599
    %v601 = vrot.slane %v597, %v600
    %v606 = vunpack.c.l.b16 %v483
    %v607 = vunpack.c.l.b16 %v484
    %v608 = vunpack.c.l.b16 %v485
    %v609 = vunpack.c.l.b16 %v486
    %v610 = vpack.c.b16 %v607, %v606
    %v611 = vpack.c.b16 %v609, %v608
    %v615 = vsel %vm145, %v596, 0
    %617 = vmatprep.subr.bf16.mxu0 0
    %618 = vmatpush1.bf16.msra.mxu0 0
    %619 = vmatprep.subr.bf16.mxu0 0
    %620 = vmatpush1.bf16.msra.mxu0 0
    %621 = vmatprep.subr.bf16.mxu0 0
    %622 = vmatpush1.bf16.msra.mxu0 0
    %623 = vmatprep.subr.bf16.mxu0 0
    %624 = vmatpush1.bf16.msra.mxu0 0
    %625 = vmatprep.subr.bf16.mxu0 0
    %626 = vmatpush1.bf16.msra.mxu0 0
    %627 = vmatprep.subr.bf16.mxu0 0
    %628 = vmatpush1.bf16.msra.mxu0 0
    %629 = vmatprep.subr.bf16.mxu0 0
    %630 = vmatpush1.bf16.msra.mxu0 %v611
    %631 = vmatprep.subr.bf16.mxu0 0
    %632 = vmatpush1.bf16.msra.mxu0 %v610
    %633 = vmatprep.subr.bf16.mxu0 0
    %634 = vmatpush2.bf16.msra.mxu0 0
    %635 = vmatprep.subr.bf16.mxu0 0
    %636 = vmatpush2.bf16.msra.mxu0 0
    %637 = vmatprep.subr.bf16.mxu0 0
    %638 = vmatpush2.bf16.msra.mxu0 0
    %639 = vmatprep.subr.bf16.mxu0 0
    %640 = vmatpush2.bf16.msra.mxu0 0
    %641 = vmatprep.subr.bf16.mxu0 0
    %642 = vmatpush2.bf16.msra.mxu0 0
    %643 = vmatprep.subr.bf16.mxu0 0
    %644 = vmatpush2.bf16.msra.mxu0 0
    %645 = vmatprep.subr.bf16.mxu0 0
    %646 = vmatpush2.bf16.msra.mxu0 0
    %647 = vmatprep.subr.bf16.mxu0 0
    %648 = vmatpush2.bf16.msra.mxu0 0
    %649 = vmatprep.mubr.bf16.mxu0 0
    %650 = vmatmul.mubr.bf16.gmra.mxu0 %v615
    %v651 = vpop.f32.mrf.mxu0
    %v652 = vadd.f32 %v601, %v651
    %v653 = vpop.f32.mrf.mxu0
    %v654 = vpop.f32.mrf.mxu0
    %v655 = vadd.f32 %v601, %v654
    %v656 = vpop.f32.mrf.mxu0
    %657 = vdwg.mxu0
    %v658 = vmax.f32 %v652, 0.0
    %v659 = vmax.f32 %v655, 0.0
    %v660 = vpack.c.bf16 %v659, %v658
    %v661 = vld [vmem:[#allocation5 + $0x9] sm:$0x1]
    %v662 = vlaneseq
    %v663 = vshrl.u32 %v662, 7
    %v664 = vsub.s32 0, %v663
    %v665 = vrot.slane %v661, %v664
    %v670 = vunpack.c.l.b16 %v488
    %v671 = vunpack.c.l.b16 %v489
    %v672 = vunpack.c.l.b16 %v490
    %v673 = vunpack.c.l.b16 %v491
    %v674 = vpack.c.b16 %v671, %v670
    %v675 = vpack.c.b16 %v673, %v672
    %v679 = vsel %vm145, %v660, 0
    %681 = vmatprep.subr.bf16.mxu0 0
    %682 = vmatpush1.bf16.msra.mxu0 0
    %683 = vmatprep.subr.bf16.mxu0 0
    %684 = vmatpush1.bf16.msra.mxu0 0
    %685 = vmatprep.subr.bf16.mxu0 0
    %686 = vmatpush1.bf16.msra.mxu0 0
    %687 = vmatprep.subr.bf16.mxu0 0
    %688 = vmatpush1.bf16.msra.mxu0 0
    %689 = vmatprep.subr.bf16.mxu0 0
    %690 = vmatpush1.bf16.msra.mxu0 0
    %691 = vmatprep.subr.bf16.mxu0 0
    %692 = vmatpush1.bf16.msra.mxu0 0
    %693 = vmatprep.subr.bf16.mxu0 0
    %694 = vmatpush1.bf16.msra.mxu0 %v675
    %695 = vmatprep.subr.bf16.mxu0 0
    %696 = vmatpush1.bf16.msra.mxu0 %v674
    %697 = vmatprep.subr.bf16.mxu0 0
    %698 = vmatpush2.bf16.msra.mxu0 0
    %699 = vmatprep.subr.bf16.mxu0 0
    %700 = vmatpush2.bf16.msra.mxu0 0
    %701 = vmatprep.subr.bf16.mxu0 0
    %702 = vmatpush2.bf16.msra.mxu0 0
    %703 = vmatprep.subr.bf16.mxu0 0
    %704 = vmatpush2.bf16.msra.mxu0 0
    %705 = vmatprep.subr.bf16.mxu0 0
    %706 = vmatpush2.bf16.msra.mxu0 0
    %707 = vmatprep.subr.bf16.mxu0 0
    %708 = vmatpush2.bf16.msra.mxu0 0
    %709 = vmatprep.subr.bf16.mxu0 0
    %710 = vmatpush2.bf16.msra.mxu0 0
    %711 = vmatprep.subr.bf16.mxu0 0
    %712 = vmatpush2.bf16.msra.mxu0 0
    %713 = vmatprep.mubr.bf16.mxu0 0
    %714 = vmatmul.mubr.bf16.gmra.mxu0 %v679
    %v715 = vpop.f32.mrf.mxu0
    %v716 = vadd.f32 %v665, %v715
    %v717 = vpop.f32.mrf.mxu0
    %v718 = vpop.f32.mrf.mxu0
    %v719 = vadd.f32 %v665, %v718
    %v720 = vpop.f32.mrf.mxu0
    %721 = vdwg.mxu0
    %v722 = vadd.f32 %v594, %v716
    %v723 = vadd.f32 %v595, %v719
    %v724 = vld [vmem:[#allocation5 + $0xc] sm:$0x1]
    %v725 = vld [vmem:[#allocation5 + $0xd] sm:$0x1]
    %v726 = vsel %vm145, %v722, 0.0
    %727 = vadd.xlane.f32.xlu0 %v726
    %v728 = vpop.xlane.xlu0 %727
    %v729 = vsel %vm145, %v723, 0.0
    %730 = vadd.xlane.f32.xlu0 %v729
    %v731 = vpop.xlane.xlu0 %730
    %v732 = vmul.f32 %v728, %v276
    %v733 = vmul.f32 %v731, %v276
    %v734 = vsub.f32 %v722, %v732
    %v735 = vsub.f32 %v723, %v733
    %v736 = vmul.f32 %v734, %v734
    %v737 = vmul.f32 %v735, %v735
    %v738 = vsel %vm145, %v736, 0.0
    %739 = vadd.xlane.f32.xlu0 %v738
    %v740 = vpop.xlane.xlu0 %739
    %v741 = vsel %vm145, %v737, 0.0
    %742 = vadd.xlane.f32.xlu0 %v741
    %v743 = vpop.xlane.xlu0 %742
    %v744 = vmul.f32 %v740, %v276
    %v745 = vmul.f32 %v743, %v276
    %v746 = vadd.f32 %v744, 1e-05
    %v747 = vadd.f32 %v745, 1e-05
    %v748 = vrsqrt.pop %v746
    %v749 = vrsqrt.pop %v747
    %v750 = vmul.f32 %v734, %v748
    %v751 = vmul.f32 %v735, %v749
    %v752 = vlaneseq
    %v753 = vshrl.u32 %v752, 7
    %v754 = vsub.s32 0, %v753
    %v755 = vrot.slane %v724, %v754
    %v756 = vmul.f32 %v750, %v755
    %v757 = vmul.f32 %v751, %v755
    %v758 = vlaneseq
    %v759 = vshrl.u32 %v758, 7
    %v760 = vsub.s32 0, %v759
    %v761 = vrot.slane %v725, %v760
    %v762 = vadd.f32 %v756, %v761
    %v763 = vadd.f32 %v757, %v761
    %v765 = vrot.slane %v762, 1
    %766 = vrot.lane.b32.xlu0 %v765, 32
    %v767 = vpop.permute.xlu0 %766
    %v769 = vrot.slane %v762, 2
    %770 = vrot.lane.b32.xlu0 %v769, 64
    %v771 = vpop.permute.xlu0 %770
    %v773 = vrot.slane %v762, 3
    %774 = vrot.lane.b32.xlu0 %v773, 96
    %v775 = vpop.permute.xlu0 %774
    %v777 = vrot.slane %v762, 4
    %v779 = vrot.slane %v762, 5
    %780 = vrot.lane.b32.xlu0 %v779, 32
    %v781 = vpop.permute.xlu0 %780
    %v783 = vrot.slane %v762, 6
    %784 = vrot.lane.b32.xlu0 %v783, 64
    %v785 = vpop.permute.xlu0 %784
    %v787 = vrot.slane %v762, 7
    %788 = vrot.lane.b32.xlu0 %v787, 96
    %v789 = vpop.permute.xlu0 %788
    %v792 = vrot.slane %v763, 1
    %793 = vrot.lane.b32.xlu0 %v792, 32
    %v794 = vpop.permute.xlu0 %793
    %v796 = vrot.slane %v763, 2
    %797 = vrot.lane.b32.xlu0 %v796, 64
    %v798 = vpop.permute.xlu0 %797
    %v800 = vrot.slane %v763, 3
    %801 = vrot.lane.b32.xlu0 %v800, 96
    %v802 = vpop.permute.xlu0 %801
    %v804 = vrot.slane %v763, 4
    %v806 = vrot.slane %v763, 5
    %807 = vrot.lane.b32.xlu0 %v806, 32
    %v808 = vpop.permute.xlu0 %807
    %v810 = vrot.slane %v763, 6
    %811 = vrot.lane.b32.xlu0 %v810, 64
    %v812 = vpop.permute.xlu0 %811
    %v814 = vrot.slane %v763, 7
    %815 = vrot.lane.b32.xlu0 %v814, 96
    %v816 = vpop.permute.xlu0 %815
    %v818 = vsel %vm145, %v762, %v767
    %vm819 = vcmask 523264
    %v820 = vsel %vm819, %v818, %v771
    %vm821 = vcmask 785408
    %v822 = vsel %vm821, %v820, %v775
    %v823 = vsel %vm145, %v777, %v781
    %v824 = vsel %vm819, %v823, %v785
    %v825 = vsel %vm821, %v824, %v789
    %v826 = vsel %vm145, %v763, %v794
    %v827 = vsel %vm819, %v826, %v798
    %v828 = vsel %vm821, %v827, %v802
    %v829 = vsel %vm145, %v804, %v808
    %v830 = vsel %vm819, %v829, %v812
    %v831 = vsel %vm821, %v830, %v816
    %v832 = vld [vmem:[#allocation7] sm:$0x3]
    %v833 = vld [vmem:[%s5] sm:$0xf]
    %838 = vrot.lane.b32.xlu0 %v822, 33
    %v839 = vpop.permute.xlu0 %838
    %840 = vrot.lane.b32.xlu0 %v825, 33
    %v841 = vpop.permute.xlu0 %840
    %842 = vrot.lane.b32.xlu0 %v828, 33
    %v843 = vpop.permute.xlu0 %842
    %844 = vrot.lane.b32.xlu0 %v831, 33
    %v845 = vpop.permute.xlu0 %844
    %vm846 = vcmask 269312
    %v847 = vsel %vm846, %v839, %v841
    %v848 = vsel %vm846, %v841, %v843
    %v849 = vsel %vm846, %v843, %v845
    %v854 = vsel %vm846, 0.0, %v839
    %855 = vrot.lane.b32.xlu0 %v822, 32
    %v856 = vpop.permute.xlu0 %855
    %857 = vrot.lane.b32.xlu0 %v825, 32
    %v858 = vpop.permute.xlu0 %857
    %859 = vrot.lane.b32.xlu0 %v828, 32
    %v860 = vpop.permute.xlu0 %859
    %861 = vrot.lane.b32.xlu0 %v831, 32
    %v862 = vpop.permute.xlu0 %861
    %v863 = vsel %vm145, %v856, %v858
    %v864 = vsel %vm145, %v858, %v860
    %v865 = vsel %vm145, %v860, %v862
    %v867 = vsel %vm145, 0.0, %v856
    %868 = vrot.lane.b32.xlu0 %v822, 31
    %v869 = vpop.permute.xlu0 %868
    %870 = vrot.lane.b32.xlu0 %v825, 31
    %v871 = vpop.permute.xlu0 %870
    %872 = vrot.lane.b32.xlu0 %v828, 31
    %v873 = vpop.permute.xlu0 %872
    %874 = vrot.lane.b32.xlu0 %v831, 31
    %v875 = vpop.permute.xlu0 %874
    %vm876 = vcmask 252928
    %v877 = vsel %vm876, %v869, %v871
    %v878 = vsel %vm876, %v871, %v873
    %v879 = vsel %vm876, %v873, %v875
    %v881 = vsel %vm876, 0.0, %v869
    %882 = vrot.lane.b32.xlu0 %v822, 1
    %v883 = vpop.permute.xlu0 %882
    %884 = vrot.lane.b32.xlu0 %v825, 1
    %v885 = vpop.permute.xlu0 %884
    %886 = vrot.lane.b32.xlu0 %v828, 1
    %v887 = vpop.permute.xlu0 %886
    %888 = vrot.lane.b32.xlu0 %v831, 1
    %v889 = vpop.permute.xlu0 %888
    %vm890 = vcmask 7168
    %v891 = vsel %vm890, %v883, %v885
    %v892 = vsel %vm890, %v885, %v887
    %v893 = vsel %vm890, %v887, %v889
    %v895 = vsel %vm890, 0.0, %v883
    %896 = vrot.lane.b32.xlu0 %v822, 127
    %v897 = vpop.permute.xlu0 %896
    %898 = vrot.lane.b32.xlu0 %v825, 127
    %v899 = vpop.permute.xlu0 %898
    %900 = vrot.lane.b32.xlu0 %v828, 127
    %v901 = vpop.permute.xlu0 %900
    %902 = vrot.lane.b32.xlu0 %v831, 127
    %v903 = vpop.permute.xlu0 %902
    %vm904 = vcmask 1039360
    %v905 = vsel %vm904, %v897, %v899
    %v906 = vsel %vm904, %v899, %v901
    %v907 = vsel %vm904, %v901, %v903
    %v909 = vsel %vm904, %v903, 0.0
    %910 = vrot.lane.b32.xlu0 %v822, 97
    %v911 = vpop.permute.xlu0 %910
    %912 = vrot.lane.b32.xlu0 %v825, 97
    %v913 = vpop.permute.xlu0 %912
    %914 = vrot.lane.b32.xlu0 %v828, 97
    %v915 = vpop.permute.xlu0 %914
    %916 = vrot.lane.b32.xlu0 %v831, 97
    %v917 = vpop.permute.xlu0 %916
    %vm918 = vcmask 793600
    %v919 = vsel %vm918, %v911, %v913
    %v920 = vsel %vm918, %v913, %v915
    %v921 = vsel %vm918, %v915, %v917
    %v923 = vsel %vm918, %v917, 0.0
    %924 = vrot.lane.b32.xlu0 %v822, 96
    %v925 = vpop.permute.xlu0 %924
    %926 = vrot.lane.b32.xlu0 %v825, 96
    %v927 = vpop.permute.xlu0 %926
    %928 = vrot.lane.b32.xlu0 %v828, 96
    %v929 = vpop.permute.xlu0 %928
    %930 = vrot.lane.b32.xlu0 %v831, 96
    %v931 = vpop.permute.xlu0 %930
    %v932 = vsel %vm821, %v925, %v927
    %v933 = vsel %vm821, %v927, %v929
    %v934 = vsel %vm821, %v929, %v931
    %v936 = vsel %vm821, %v931, 0.0
    %937 = vrot.lane.b32.xlu0 %v822, 95
    %v938 = vpop.permute.xlu0 %937
    %939 = vrot.lane.b32.xlu0 %v825, 95
    %v940 = vpop.permute.xlu0 %939
    %941 = vrot.lane.b32.xlu0 %v828, 95
    %v942 = vpop.permute.xlu0 %941
    %943 = vrot.lane.b32.xlu0 %v831, 95
    %v944 = vpop.permute.xlu0 %943
    %vm945 = vcmask 777216
    %v946 = vsel %vm945, %v938, %v940
    %v947 = vsel %vm945, %v940, %v942
    %v948 = vsel %vm945, %v942, %v944
    %v953 = vsel %vm945, %v944, 0.0
    %v955 = vrot.slane %v867, 7
    %v956 = vrot.slane %v863, 7
    %v957 = vrot.slane %v864, 7
    %v958 = vrot.slane %v865, 7
    %v964 = vrot.slane %v881, 6
    %v965 = vrot.slane %v877, 6
    %v966 = vrot.slane %v878, 6
    %v967 = vrot.slane %v879, 6
    %v973 = vrot.slane %v895, 5
    %v974 = vrot.slane %v891, 5
    %v975 = vrot.slane %v892, 5
    %v976 = vrot.slane %v893, 5
    %v981 = vrot.slane %v822, 4
    %v982 = vrot.slane %v825, 4
    %v983 = vrot.slane %v828, 4
    %v984 = vrot.slane %v831, 4
    %v990 = vrot.slane %v905, 3
    %v991 = vrot.slane %v906, 3
    %v992 = vrot.slane %v907, 3
    %v993 = vrot.slane %v909, 3
    %v999 = vrot.slane %v919, 2
    %v1000 = vrot.slane %v920, 2
    %v1001 = vrot.slane %v921, 2
    %v1002 = vrot.slane %v923, 2
    %v1008 = vrot.slane %v932, 1
    %v1009 = vrot.slane %v933, 1
    %v1010 = vrot.slane %v934, 1
    %v1011 = vrot.slane %v936, 1
    %vm1016 = vcmask 1040384
    %v1017 = vsel %vm1016, %v854, %v955
    %v1018 = vsel %vm1016, %v847, %v956
    %v1019 = vsel %vm1016, %v848, %v957
    %v1020 = vsel %vm1016, %v849, %v958
    %vm1021 = vcmask 1041408
    %v1022 = vsel %vm1021, %v1017, %v964
    %v1023 = vsel %vm1021, %v1018, %v965
    %v1024 = vsel %vm1021, %v1019, %v966
    %v1025 = vsel %vm1021, %v1020, %v967
    %vm1026 = vcmask 1042432
    %v1027 = vsel %vm1026, %v1022, %v973
    %v1028 = vsel %vm1026, %v1023, %v974
    %v1029 = vsel %vm1026, %v1024, %v975
    %v1030 = vsel %vm1026, %v1025, %v976
    %vm1031 = vcmask 1043456
    %v1032 = vsel %vm1031, %v1027, %v981
    %v1033 = vsel %vm1031, %v1028, %v982
    %v1034 = vsel %vm1031, %v1029, %v983
    %v1035 = vsel %vm1031, %v1030, %v984
    %vm1036 = vcmask 1044480
    %v1037 = vsel %vm1036, %v1032, %v990
    %v1038 = vsel %vm1036, %v1033, %v991
    %v1039 = vsel %vm1036, %v1034, %v992
    %v1040 = vsel %vm1036, %v1035, %v993
    %vm1041 = vcmask 1045504
    %v1042 = vsel %vm1041, %v1037, %v999
    %v1043 = vsel %vm1041, %v1038, %v1000
    %v1044 = vsel %vm1041, %v1039, %v1001
    %v1045 = vsel %vm1041, %v1040, %v1002
    %vm1046 = vcmask 1046528
    %v1047 = vsel %vm1046, %v1042, %v1008
    %v1048 = vsel %vm1046, %v1043, %v1009
    %v1049 = vsel %vm1046, %v1044, %v1010
    %v1050 = vsel %vm1046, %v1045, %v1011
    %v1051 = vld [vmem:[%s6] sm:$0xff]
    %v1052 = vld [vmem:[%s6 + $0x8] sm:$0xff]
    %v1053 = vld [vmem:[%s6 + $0x10] sm:$0xff]
    %v1054 = vld [vmem:[%s6 + $0x18] sm:$0xff]
    %v1055 = vld [vmem:[%s6 + $0x20] sm:$0x1]
    %v1056 = vld [vmem:[%s6 + $0x28] sm:$0x1]
    %v1057 = vld [vmem:[%s6 + $0x30] sm:$0x1]
    %v1058 = vld [vmem:[%s6 + $0x38] sm:$0x1]
    %v1059 = vmul.f32 %v1047, %v1051
    %v1060 = vmul.f32 %v1048, %v1052
    %v1061 = vmul.f32 %v1049, %v1053
    %v1062 = vmul.f32 %v1050, %v1054
    %v1063 = vmul.f32 %v946, %v1055
    %v1064 = vmul.f32 %v947, %v1056
    %v1065 = vmul.f32 %v948, %v1057
    %v1066 = vmul.f32 %v953, %v1058
    %v1067 = vpack.c.bf16 %v1063, %v1059
    %v1068 = vpack.c.bf16 %v1064, %v1060
    %v1069 = vpack.c.bf16 %v1065, %v1061
    %v1070 = vpack.c.bf16 %v1066, %v1062
    %1072 = vset.pattern.permute.xlu0 0
    %1073 = vperm.xlu0 %1072, %v833
    %v1074 = vpop.permute.xlu0 %1073
    %vm1076 = vcmask 72704
    %v1078 = vsel %vm1076, %v832, 0
    %v1080 = vsel %vm1031, 4294967295, 65535
    %v1081 = vsel %vm1036, %v1080, 0
    %v1083 = vand.u32 %v1067, %v1081
    %v1086 = vand.u32 %v1068, %v1081
    %v1089 = vand.u32 %v1069, %v1081
    %v1092 = vand.u32 %v1070, %v1081
    %1094 = vmatprep.subr.bf16.mxu0 0
    %1095 = vmatpush1.bf16.msra.mxu0 0
    %1096 = vmatprep.subr.bf16.mxu0 0
    %1097 = vmatpush1.bf16.msra.mxu0 0
    %1098 = vmatprep.subr.bf16.mxu0 0
    %1099 = vmatpush1.bf16.msra.mxu0 0
    %1100 = vmatprep.subr.bf16.mxu0 0
    %1101 = vmatpush1.bf16.msra.mxu0 0
    %1102 = vmatprep.subr.bf16.mxu0 0
    %1103 = vmatpush1.bf16.msra.mxu0 0
    %1104 = vmatprep.subr.bf16.mxu0 0
    %1105 = vmatpush1.bf16.msra.mxu0 0
    %1106 = vmatprep.subr.bf16.mxu0 0
    %1107 = vmatpush1.bf16.msra.mxu0 0
    %1108 = vmatprep.subr.bf16.mxu0 %v1086
    %1109 = vmatpush1.bf16.msra.mxu0 %v1083
    %1110 = vmatprep.subr.bf16.mxu0 0
    %1111 = vmatpush2.bf16.msra.mxu0 0
    %1112 = vmatprep.subr.bf16.mxu0 0
    %1113 = vmatpush2.bf16.msra.mxu0 0
    %1114 = vmatprep.subr.bf16.mxu0 0
    %1115 = vmatpush2.bf16.msra.mxu0 0
    %1116 = vmatprep.subr.bf16.mxu0 0
    %1117 = vmatpush2.bf16.msra.mxu0 0
    %1118 = vmatprep.subr.bf16.mxu0 0
    %1119 = vmatpush2.bf16.msra.mxu0 0
    %1120 = vmatprep.subr.bf16.mxu0 0
    %1121 = vmatpush2.bf16.msra.mxu0 0
    %1122 = vmatprep.subr.bf16.mxu0 0
    %1123 = vmatpush2.bf16.msra.mxu0 0
    %1124 = vmatprep.subr.bf16.mxu0 0
    %1125 = vmatpush2.bf16.msra.mxu0 0
    %1126 = vmatprep.mubr.bf16.mxu0 0
    %1127 = vmatmul.mubr.bf16.gmra.mxu0 %v1078
    %v1128 = vpop.f32.mrf.mxu0
    %v1129 = vadd.f32 %v1074, %v1128
    %v1130 = vpop.f32.mrf.mxu0
    %v1131 = vadd.f32 %v1074, %v1130
    %v1132 = vpop.f32.mrf.mxu0
    %v1133 = vpop.f32.mrf.mxu0
    %1134 = vdwg.mxu0
    %1135 = vmatprep.subr.bf16.mxu0 0
    %1136 = vmatpush1.bf16.msra.mxu0 0
    %1137 = vmatprep.subr.bf16.mxu0 0
    %1138 = vmatpush1.bf16.msra.mxu0 0
    %1139 = vmatprep.subr.bf16.mxu0 0
    %1140 = vmatpush1.bf16.msra.mxu0 0
    %1141 = vmatprep.subr.bf16.mxu0 0
    %1142 = vmatpush1.bf16.msra.mxu0 0
    %1143 = vmatprep.subr.bf16.mxu0 0
    %1144 = vmatpush1.bf16.msra.mxu0 0
    %1145 = vmatprep.subr.bf16.mxu0 0
    %1146 = vmatpush1.bf16.msra.mxu0 0
    %1147 = vmatprep.subr.bf16.mxu0 0
    %1148 = vmatpush1.bf16.msra.mxu0 0
    %1149 = vmatprep.subr.bf16.mxu0 %v1092
    %1150 = vmatpush1.bf16.msra.mxu0 %v1089
    %1151 = vmatprep.subr.bf16.mxu0 0
    %1152 = vmatpush2.bf16.msra.mxu0 0
    %1153 = vmatprep.subr.bf16.mxu0 0
    %1154 = vmatpush2.bf16.msra.mxu0 0
    %1155 = vmatprep.subr.bf16.mxu0 0
    %1156 = vmatpush2.bf16.msra.mxu0 0
    %1157 = vmatprep.subr.bf16.mxu0 0
    %1158 = vmatpush2.bf16.msra.mxu0 0
    %1159 = vmatprep.subr.bf16.mxu0 0
    %1160 = vmatpush2.bf16.msra.mxu0 0
    %1161 = vmatprep.subr.bf16.mxu0 0
    %1162 = vmatpush2.bf16.msra.mxu0 0
    %1163 = vmatprep.subr.bf16.mxu0 0
    %1164 = vmatpush2.bf16.msra.mxu0 0
    %1165 = vmatprep.subr.bf16.mxu0 0
    %1166 = vmatpush2.bf16.msra.mxu0 0
    %1167 = vmatprep.mubr.bf16.mxu0 0
    %1168 = vmatmul.mubr.bf16.gmra.mxu0 %v1078
    %v1169 = vpop.f32.mrf.mxu0
    %v1170 = vadd.f32 %v1074, %v1169
    %v1171 = vpop.f32.mrf.mxu0
    %v1172 = vadd.f32 %v1074, %v1171
    %v1173 = vpop.f32.mrf.mxu0
    %v1174 = vpop.f32.mrf.mxu0
    %1175 = vdwg.mxu0
    %v1176 = vmax.f32 %v1129, 0.0
    %v1177 = vmax.f32 %v1131, 0.0
    %v1178 = vmax.f32 %v1170, 0.0
    %v1179 = vmax.f32 %v1172, 0.0
    %1184 = vrot.lane.b32.xlu0 %v1176, 127
    %v1185 = vpop.permute.xlu0 %1184
    %1186 = vrot.lane.b32.xlu0 %v1177, 127
    %v1187 = vpop.permute.xlu0 %1186
    %1188 = vrot.lane.b32.xlu0 %v1178, 127
    %v1189 = vpop.permute.xlu0 %1188
    %1190 = vrot.lane.b32.xlu0 %v1179, 127
    %v1191 = vpop.permute.xlu0 %1190
    %v1192 = vsel %vm904, %v1185, %v1187
    %v1193 = vsel %vm904, %v1187, %v1189
    %v1194 = vsel %vm904, %v1189, %v1191
    %v1199 = vsel %vm904, %v1191, 0.0
    %v1200 = vmax.f32 %v1176, %v1192
    %v1201 = vmax.f32 %v1177, %v1193
    %v1202 = vmax.f32 %v1178, %v1194
    %v1203 = vmax.f32 %v1179, %v1199
    %1204 = vrot.lane.b32.xlu0 %v1176, 96
    %v1205 = vpop.permute.xlu0 %1204
    %1206 = vrot.lane.b32.xlu0 %v1177, 96
    %v1207 = vpop.permute.xlu0 %1206
    %1208 = vrot.lane.b32.xlu0 %v1178, 96
    %v1209 = vpop.permute.xlu0 %1208
    %1210 = vrot.lane.b32.xlu0 %v1179, 96
    %v1211 = vpop.permute.xlu0 %1210
    %v1212 = vsel %vm821, %v1205, %v1207
    %v1213 = vsel %vm821, %v1207, %v1209
    %v1214 = vsel %vm821, %v1209, %v1211
    %v1219 = vsel %vm821, %v1211, 0.0
    %1220 = vrot.lane.b32.xlu0 %v1176, 95
    %v1221 = vpop.permute.xlu0 %1220
    %1222 = vrot.lane.b32.xlu0 %v1177, 95
    %v1223 = vpop.permute.xlu0 %1222
    %1224 = vrot.lane.b32.xlu0 %v1178, 95
    %v1225 = vpop.permute.xlu0 %1224
    %1226 = vrot.lane.b32.xlu0 %v1179, 95
    %v1227 = vpop.permute.xlu0 %1226
    %v1228 = vsel %vm945, %v1221, %v1223
    %v1229 = vsel %vm945, %v1223, %v1225
    %v1230 = vsel %vm945, %v1225, %v1227
    %v1235 = vsel %vm945, %v1227, 0.0
    %v1236 = vmax.f32 %v1212, %v1228
    %v1237 = vmax.f32 %v1213, %v1229
    %v1238 = vmax.f32 %v1214, %v1230
    %v1239 = vmax.f32 %v1219, %v1235
    %v1240 = vmax.f32 %v1200, %v1236
    %v1241 = vmax.f32 %v1201, %v1237
    %v1242 = vmax.f32 %v1202, %v1238
    %v1243 = vmax.f32 %v1203, %v1239
    %v1244 = vpack.c.bf16 %v1240, %v1240
    %v1245 = vpack.c.bf16 %v1241, %v1241
    %v1246 = vpack.c.bf16 %v1242, %v1242
    %v1247 = vpack.c.bf16 %v1243, %v1243
    %v1248 = vld [vmem:[%s9] sm:$0xf]
    %v1249 = vld [vmem:[%s9 + $0x4] sm:$0xf]
    %v1250 = vld [vmem:[%s9 + $0x8] sm:$0xf]
    %v1251 = vld [vmem:[%s9 + $0xc] sm:$0xf]
    %v1252 = vld [vmem:[%s9 + $0x10] sm:$0xf]
    %v1253 = vld [vmem:[%s9 + $0x14] sm:$0xf]
    %v1254 = vld [vmem:[%s9 + $0x18] sm:$0xf]
    %v1255 = vld [vmem:[%s9 + $0x1c] sm:$0xf]
    %v1256 = vld [vmem:[%s9 + $0x20] sm:$0xf]
    %v1257 = vld [vmem:[%s9 + $0x24] sm:$0xf]
    %v1258 = vld [vmem:[%s9 + $0x28] sm:$0xf]
    %v1259 = vld [vmem:[%s9 + $0x2c] sm:$0xf]
    %v1260 = vld [vmem:[%s9 + $0x30] sm:$0xf]
    %v1261 = vld [vmem:[%s9 + $0x34] sm:$0xf]
    %v1262 = vld [vmem:[%s9 + $0x38] sm:$0xf]
    %v1263 = vld [vmem:[%s9 + $0x3c] sm:$0xf]
    %v1264 = vld [vmem:[%s9 + $0x40] sm:$0xf]
    %v1265 = vld [vmem:[%s9 + $0x44] sm:$0xf]
    %v1266 = vld [vmem:[%s9 + $0x48] sm:$0xf]
    %v1267 = vld [vmem:[%s9 + $0x4c] sm:$0xf]
    %v1268 = vld [vmem:[%s9 + $0x50] sm:$0xf]
    %v1269 = vld [vmem:[%s9 + $0x54] sm:$0xf]
    %v1270 = vld [vmem:[%s9 + $0x58] sm:$0xf]
    %v1271 = vld [vmem:[%s9 + $0x5c] sm:$0xf]
    %v1272 = vld [vmem:[%s9 + $0x60] sm:$0xf]
    %v1273 = vld [vmem:[%s9 + $0x64] sm:$0xf]
    %v1274 = vld [vmem:[%s9 + $0x68] sm:$0xf]
    %v1275 = vld [vmem:[%s9 + $0x6c] sm:$0xf]
    %v1276 = vld [vmem:[%s9 + $0x70] sm:$0xf]
    %v1277 = vld [vmem:[%s9 + $0x74] sm:$0xf]
    %v1278 = vld [vmem:[%s9 + $0x78] sm:$0xf]
    %v1279 = vld [vmem:[%s9 + $0x7c] sm:$0xf]
    %v1280 = vld [vmem:[%s9 + $0x80] sm:$0xf]
    %v1281 = vld [vmem:[%s9 + $0x84] sm:$0xf]
    %v1282 = vld [vmem:[%s9 + $0x88] sm:$0xf]
    %v1283 = vld [vmem:[%s9 + $0x8c] sm:$0xf]
    %v1284 = vld [vmem:[%s9 + $0x90] sm:$0xf]
    %v1285 = vld [vmem:[%s9 + $0x94] sm:$0xf]
    %v1286 = vld [vmem:[%s9 + $0x98] sm:$0xf]
    %v1287 = vld [vmem:[%s9 + $0x9c] sm:$0xf]
    %v1288 = vld [vmem:[%s9 + $0xa0] sm:$0xf]
    %v1289 = vld [vmem:[%s9 + $0xa4] sm:$0xf]
    %v1290 = vld [vmem:[%s9 + $0xa8] sm:$0xf]
    %v1291 = vld [vmem:[%s9 + $0xac] sm:$0xf]
    %v1292 = vld [vmem:[%s9 + $0xb0] sm:$0xf]
    %v1293 = vld [vmem:[%s9 + $0xb4] sm:$0xf]
    %v1294 = vld [vmem:[%s9 + $0xb8] sm:$0xf]
    %v1295 = vld [vmem:[%s9 + $0xbc] sm:$0xf]
    %v1296 = vld [vmem:[%s9 + $0xc0] sm:$0xf]
    %v1297 = vld [vmem:[%s9 + $0xc4] sm:$0xf]
    %v1298 = vld [vmem:[%s9 + $0xc8] sm:$0xf]
    %v1299 = vld [vmem:[%s9 + $0xcc] sm:$0xf]
    %v1300 = vld [vmem:[%s9 + $0xd0] sm:$0xf]
    %v1301 = vld [vmem:[%s9 + $0xd4] sm:$0xf]
    %v1302 = vld [vmem:[%s9 + $0xd8] sm:$0xf]
    %v1303 = vld [vmem:[%s9 + $0xdc] sm:$0xf]
    %v1304 = vld [vmem:[%s9 + $0xe0] sm:$0xf]
    %v1305 = vld [vmem:[%s9 + $0xe4] sm:$0xf]
    %v1306 = vld [vmem:[%s9 + $0xe8] sm:$0xf]
    %v1307 = vld [vmem:[%s9 + $0xec] sm:$0xf]
    %v1308 = vld [vmem:[%s9 + $0xf0] sm:$0xf]
    %v1309 = vld [vmem:[%s9 + $0xf4] sm:$0xf]
    %v1310 = vld [vmem:[%s9 + $0xf8] sm:$0xf]
    %v1311 = vld [vmem:[%s9 + $0xfc] sm:$0xf]
    %v1376 = vunpack.c.l.b16 %v1248
    %v1377 = vunpack.c.l.b16 %v1249
    %v1378 = vunpack.c.l.b16 %v1250
    %v1379 = vunpack.c.l.b16 %v1251
    %v1380 = vunpack.c.l.b16 %v1252
    %v1381 = vunpack.c.l.b16 %v1253
    %v1382 = vunpack.c.l.b16 %v1254
    %v1383 = vunpack.c.l.b16 %v1255
    %v1384 = vunpack.c.l.b16 %v1256
    %v1385 = vunpack.c.l.b16 %v1257
    %v1386 = vunpack.c.l.b16 %v1258
    %v1387 = vunpack.c.l.b16 %v1259
    %v1388 = vunpack.c.l.b16 %v1260
    %v1389 = vunpack.c.l.b16 %v1261
    %v1390 = vunpack.c.l.b16 %v1262
    %v1391 = vunpack.c.l.b16 %v1263
    %v1392 = vunpack.c.l.b16 %v1264
    %v1393 = vunpack.c.l.b16 %v1265
    %v1394 = vunpack.c.l.b16 %v1266
    %v1395 = vunpack.c.l.b16 %v1267
    %v1396 = vunpack.c.l.b16 %v1268
    %v1397 = vunpack.c.l.b16 %v1269
    %v1398 = vunpack.c.l.b16 %v1270
    %v1399 = vunpack.c.l.b16 %v1271
    %v1400 = vunpack.c.l.b16 %v1272
    %v1401 = vunpack.c.l.b16 %v1273
    %v1402 = vunpack.c.l.b16 %v1274
    %v1403 = vunpack.c.l.b16 %v1275
    %v1404 = vunpack.c.l.b16 %v1276
    %v1405 = vunpack.c.l.b16 %v1277
    %v1406 = vunpack.c.l.b16 %v1278
    %v1407 = vunpack.c.l.b16 %v1279
    %v1408 = vunpack.c.l.b16 %v1280
    %v1409 = vunpack.c.l.b16 %v1281
    %v1410 = vunpack.c.l.b16 %v1282
    %v1411 = vunpack.c.l.b16 %v1283
    %v1412 = vunpack.c.l.b16 %v1284
    %v1413 = vunpack.c.l.b16 %v1285
    %v1414 = vunpack.c.l.b16 %v1286
    %v1415 = vunpack.c.l.b16 %v1287
    %v1416 = vunpack.c.l.b16 %v1288
    %v1417 = vunpack.c.l.b16 %v1289
    %v1418 = vunpack.c.l.b16 %v1290
    %v1419 = vunpack.c.l.b16 %v1291
    %v1420 = vunpack.c.l.b16 %v1292
    %v1421 = vunpack.c.l.b16 %v1293
    %v1422 = vunpack.c.l.b16 %v1294
    %v1423 = vunpack.c.l.b16 %v1295
    %v1424 = vunpack.c.l.b16 %v1296
    %v1425 = vunpack.c.l.b16 %v1297
    %v1426 = vunpack.c.l.b16 %v1298
    %v1427 = vunpack.c.l.b16 %v1299
    %v1428 = vunpack.c.l.b16 %v1300
    %v1429 = vunpack.c.l.b16 %v1301
    %v1430 = vunpack.c.l.b16 %v1302
    %v1431 = vunpack.c.l.b16 %v1303
    %v1432 = vunpack.c.l.b16 %v1304
    %v1433 = vunpack.c.l.b16 %v1305
    %v1434 = vunpack.c.l.b16 %v1306
    %v1435 = vunpack.c.l.b16 %v1307
    %v1436 = vunpack.c.l.b16 %v1308
    %v1437 = vunpack.c.l.b16 %v1309
    %v1438 = vunpack.c.l.b16 %v1310
    %v1439 = vunpack.c.l.b16 %v1311
    %v1440 = vpack.c.b16 %v1377, %v1376
    %v1441 = vpack.c.b16 %v1379, %v1378
    %v1442 = vpack.c.b16 %v1381, %v1380
    %v1443 = vpack.c.b16 %v1383, %v1382
    %v1444 = vpack.c.b16 %v1385, %v1384
    %v1445 = vpack.c.b16 %v1387, %v1386
    %v1446 = vpack.c.b16 %v1389, %v1388
    %v1447 = vpack.c.b16 %v1391, %v1390
    %v1448 = vpack.c.b16 %v1393, %v1392
    %v1449 = vpack.c.b16 %v1395, %v1394
    %v1450 = vpack.c.b16 %v1397, %v1396
    %v1451 = vpack.c.b16 %v1399, %v1398
    %v1452 = vpack.c.b16 %v1401, %v1400
    %v1453 = vpack.c.b16 %v1403, %v1402
    %v1454 = vpack.c.b16 %v1405, %v1404
    %v1455 = vpack.c.b16 %v1407, %v1406
    %v1456 = vpack.c.b16 %v1409, %v1408
    %v1457 = vpack.c.b16 %v1411, %v1410
    %v1458 = vpack.c.b16 %v1413, %v1412
    %v1459 = vpack.c.b16 %v1415, %v1414
    %v1460 = vpack.c.b16 %v1417, %v1416
    %v1461 = vpack.c.b16 %v1419, %v1418
    %v1462 = vpack.c.b16 %v1421, %v1420
    %v1463 = vpack.c.b16 %v1423, %v1422
    %v1464 = vpack.c.b16 %v1425, %v1424
    %v1465 = vpack.c.b16 %v1427, %v1426
    %v1466 = vpack.c.b16 %v1429, %v1428
    %v1467 = vpack.c.b16 %v1431, %v1430
    %v1468 = vpack.c.b16 %v1433, %v1432
    %v1469 = vpack.c.b16 %v1435, %v1434
    %v1470 = vpack.c.b16 %v1437, %v1436
    %v1471 = vpack.c.b16 %v1439, %v1438
    %1504 = vmatprep.subr.bf16.mxu0 0
    %1505 = vmatpush1.bf16.msra.mxu0 %v1447
    %1506 = vmatprep.subr.bf16.mxu0 0
    %1507 = vmatpush1.bf16.msra.mxu0 %v1446
    %1508 = vmatprep.subr.bf16.mxu0 0
    %1509 = vmatpush1.bf16.msra.mxu0 %v1445
    %1510 = vmatprep.subr.bf16.mxu0 0
    %1511 = vmatpush1.bf16.msra.mxu0 %v1444
    %1512 = vmatprep.subr.bf16.mxu0 0
    %1513 = vmatpush1.bf16.msra.mxu0 %v1443
    %1514 = vmatprep.subr.bf16.mxu0 0
    %1515 = vmatpush1.bf16.msra.mxu0 %v1442
    %1516 = vmatprep.subr.bf16.mxu0 0
    %1517 = vmatpush1.bf16.msra.mxu0 %v1441
    %1518 = vmatprep.subr.bf16.mxu0 0
    %1519 = vmatpush1.bf16.msra.mxu0 %v1440
    %1520 = vmatprep.subr.bf16.mxu0 0
    %1521 = vmatpush2.bf16.msra.mxu0 %v1455
    %1522 = vmatprep.subr.bf16.mxu0 0
    %1523 = vmatpush2.bf16.msra.mxu0 %v1454
    %1524 = vmatprep.subr.bf16.mxu0 0
    %1525 = vmatpush2.bf16.msra.mxu0 %v1453
    %1526 = vmatprep.subr.bf16.mxu0 0
    %1527 = vmatpush2.bf16.msra.mxu0 %v1452
    %1528 = vmatprep.subr.bf16.mxu0 0
    %1529 = vmatpush2.bf16.msra.mxu0 %v1451
    %1530 = vmatprep.subr.bf16.mxu0 0
    %1531 = vmatpush2.bf16.msra.mxu0 %v1450
    %1532 = vmatprep.subr.bf16.mxu0 0
    %1533 = vmatpush2.bf16.msra.mxu0 %v1449
    %1534 = vmatprep.subr.bf16.mxu0 0
    %1535 = vmatpush2.bf16.msra.mxu0 %v1448
    %1536 = vmatprep.mubr.bf16.mxu0 %v1245
    %1537 = vmatmul.mubr.bf16.gmra.mxu0 %v1244
    %v1538 = vpop.f32.mrf.mxu0
    %v1539 = vadd.f32 0.0, %v1538
    %v1540 = vpop.f32.mrf.mxu0
    %v1541 = vpop.f32.mrf.mxu0
    %v1542 = vpop.f32.mrf.mxu0
    %1543 = vdwg.mxu0
    %1544 = vmatprep.subr.bf16.mxu0 0
    %1545 = vmatpush1.bf16.msra.mxu0 %v1463
    %1546 = vmatprep.subr.bf16.mxu0 0
    %1547 = vmatpush1.bf16.msra.mxu0 %v1462
    %1548 = vmatprep.subr.bf16.mxu0 0
    %1549 = vmatpush1.bf16.msra.mxu0 %v1461
    %1550 = vmatprep.subr.bf16.mxu0 0
    %1551 = vmatpush1.bf16.msra.mxu0 %v1460
    %1552 = vmatprep.subr.bf16.mxu0 0
    %1553 = vmatpush1.bf16.msra.mxu0 %v1459
    %1554 = vmatprep.subr.bf16.mxu0 0
    %1555 = vmatpush1.bf16.msra.mxu0 %v1458
    %1556 = vmatprep.subr.bf16.mxu0 0
    %1557 = vmatpush1.bf16.msra.mxu0 %v1457
    %1558 = vmatprep.subr.bf16.mxu0 0
    %1559 = vmatpush1.bf16.msra.mxu0 %v1456
    %1560 = vmatprep.subr.bf16.mxu0 0
    %1561 = vmatpush2.bf16.msra.mxu0 %v1471
    %1562 = vmatprep.subr.bf16.mxu0 0
    %1563 = vmatpush2.bf16.msra.mxu0 %v1470
    %1564 = vmatprep.subr.bf16.mxu0 0
    %1565 = vmatpush2.bf16.msra.mxu0 %v1469
    %1566 = vmatprep.subr.bf16.mxu0 0
    %1567 = vmatpush2.bf16.msra.mxu0 %v1468
    %1568 = vmatprep.subr.bf16.mxu0 0
    %1569 = vmatpush2.bf16.msra.mxu0 %v1467
    %1570 = vmatprep.subr.bf16.mxu0 0
    %1571 = vmatpush2.bf16.msra.mxu0 %v1466
    %1572 = vmatprep.subr.bf16.mxu0 0
    %1573 = vmatpush2.bf16.msra.mxu0 %v1465
    %1574 = vmatprep.subr.bf16.mxu0 0
    %1575 = vmatpush2.bf16.msra.mxu0 %v1464
    %1576 = vmatprep.mubr.bf16.mxu0 %v1247
    %1577 = vmatmul.mubr.bf16.gmra.mxu0 %v1246
    %v1578 = vpop.f32.mrf.mxu0
    %v1579 = vadd.f32 %v1539, %v1578
    %v1580 = vpop.f32.mrf.mxu0
    %v1581 = vpop.f32.mrf.mxu0
    %v1582 = vpop.f32.mrf.mxu0
    %1583 = vdwg.mxu0
    %s1584 = scalar_lea.vmem [#allocation7], 4
    %v1585 = vld [vmem:[%s1584] sm:$0xf]
    %s1586 = scalar_lea.vmem %s5, 8
    %v1587 = vld [vmem:[%s1586] sm:$0xff]
    %1589 = vrot.lane.b32.xlu0 %v1579, 17
    %v1590 = vpop.permute.xlu0 %1589
    %vm1592 = vcmask 138240
    %v1593 = vsel %vm1592, 0.0, %v1590
    %1594 = vrot.lane.b32.xlu0 %v1579, 16
    %v1595 = vpop.permute.xlu0 %1594
    %vm1597 = vcmask 130048
    %v1598 = vsel %vm1597, 0.0, %v1595
    %1599 = vrot.lane.b32.xlu0 %v1579, 15
    %v1600 = vpop.permute.xlu0 %1599
    %vm1602 = vcmask 121856
    %v1603 = vsel %vm1602, 0.0, %v1600
    %1604 = vrot.lane.b32.xlu0 %v1579, 1
    %v1605 = vpop.permute.xlu0 %1604
    %v1607 = vsel %vm890, 0.0, %v1605
    %1608 = vrot.lane.b32.xlu0 %v1579, 127
    %v1609 = vpop.permute.xlu0 %1608
    %v1611 = vsel %vm904, %v1609, 0.0
    %1612 = vrot.lane.b32.xlu0 %v1579, 113
    %v1613 = vpop.permute.xlu0 %1612
    %vm1615 = vcmask 924672
    %v1616 = vsel %vm1615, %v1613, 0.0
    %1617 = vrot.lane.b32.xlu0 %v1579, 112
    %v1618 = vpop.permute.xlu0 %1617
    %vm1620 = vcmask 916480
    %v1621 = vsel %vm1620, %v1618, 0.0
    %1622 = vrot.lane.b32.xlu0 %v1579, 111
    %v1623 = vpop.permute.xlu0 %1622
    %vm1625 = vcmask 908288
    %v1626 = vsel %vm1625, %v1623, 0.0
    %v1628 = vrot.slane %v1598, 4
    %v1631 = vrot.slane %v1607, 4
    %v1634 = vrot.slane %v1611, 4
    %v1637 = vrot.slane %v1621, 4
    %v1639 = vsel %vm1031, %v1593, %v1628
    %v1640 = vsel %vm1031, %v1603, %v1631
    %v1641 = vsel %vm1031, %v1579, %v1634
    %v1642 = vsel %vm1031, %v1616, %v1637
    %v1643 = vld [vmem:[#allocation8] sm:$0xff]
    %v1644 = vld [vmem:[#allocation8 + $0x8] sm:$0xff]
    %v1645 = vld [vmem:[#allocation8 + $0x10] sm:$0xff]
    %v1646 = vld [vmem:[#allocation8 + $0x18] sm:$0xff]
    %v1647 = vld [vmem:[#allocation8 + $0x20] sm:$0xf]
    %v1648 = vmul.f32 %v1639, %v1643
    %v1649 = vmul.f32 %v1640, %v1644
    %v1650 = vmul.f32 %v1641, %v1645
    %v1651 = vmul.f32 %v1642, %v1646
    %v1652 = vmul.f32 %v1626, %v1647
    %v1653 = vpack.c.bf16 %v1649, %v1648
    %v1654 = vpack.c.bf16 %v1651, %v1650
    %v1655 = vpack.c.bf16 %v1652, %v1652
    %1657 = vset.pattern.permute.xlu0 0
    %1658 = vperm.xlu0 %1657, %v1587
    %v1659 = vpop.permute.xlu0 %1658
    %vm1661 = vcmask 293888
    %v1663 = vsel %vm1661, %v1585, 0
    %v1666 = vsel %vm1021, %v1655, 0
    %1668 = vmatprep.subr.bf16.mxu0 0
    %1669 = vmatpush1.bf16.msra.mxu0 0
    %1670 = vmatprep.subr.bf16.mxu0 0
    %1671 = vmatpush1.bf16.msra.mxu0 0
    %1672 = vmatprep.subr.bf16.mxu0 0
    %1673 = vmatpush1.bf16.msra.mxu0 0
    %1674 = vmatprep.subr.bf16.mxu0 0
    %1675 = vmatpush1.bf16.msra.mxu0 0
    %1676 = vmatprep.subr.bf16.mxu0 0
    %1677 = vmatpush1.bf16.msra.mxu0 0
    %1678 = vmatprep.subr.bf16.mxu0 0
    %1679 = vmatpush1.bf16.msra.mxu0 %v1666
    %1680 = vmatprep.subr.bf16.mxu0 0
    %1681 = vmatpush1.bf16.msra.mxu0 %v1654
    %1682 = vmatprep.subr.bf16.mxu0 0
    %1683 = vmatpush1.bf16.msra.mxu0 %v1653
    %1684 = vmatprep.subr.bf16.mxu0 0
    %1685 = vmatpush2.bf16.msra.mxu0 0
    %1686 = vmatprep.subr.bf16.mxu0 0
    %1687 = vmatpush2.bf16.msra.mxu0 0
    %1688 = vmatprep.subr.bf16.mxu0 0
    %1689 = vmatpush2.bf16.msra.mxu0 0
    %1690 = vmatprep.subr.bf16.mxu0 0
    %1691 = vmatpush2.bf16.msra.mxu0 0
    %1692 = vmatprep.subr.bf16.mxu0 0
    %1693 = vmatpush2.bf16.msra.mxu0 0
    %1694 = vmatprep.subr.bf16.mxu0 0
    %1695 = vmatpush2.bf16.msra.mxu0 0
    %1696 = vmatprep.subr.bf16.mxu0 0
    %1697 = vmatpush2.bf16.msra.mxu0 0
    %1698 = vmatprep.subr.bf16.mxu0 0
    %1699 = vmatpush2.bf16.msra.mxu0 0
    %1700 = vmatprep.mubr.bf16.mxu0 0
    %1701 = vmatmul.mubr.bf16.gmra.mxu0 %v1663
    %v1702 = vpop.f32.mrf.mxu0
    %v1703 = vadd.f32 %v1659, %v1702
    %v1704 = vpop.f32.mrf.mxu0
    %v1705 = vpop.f32.mrf.mxu0
    %v1706 = vpop.f32.mrf.mxu0
    %1707 = vdwg.mxu0
    %v1708 = vmax.f32 %v1703, 0.0
    %1710 = vrot.lane.b32.xlu0 %v1708, 127
    %v1711 = vpop.permute.xlu0 %1710
    %v1713 = vsel %vm904, %v1711, 0.0
    %v1714 = vmax.f32 %v1708, %v1713
    %1715 = vrot.lane.b32.xlu0 %v1708, 112
    %v1716 = vpop.permute.xlu0 %1715
    %v1718 = vsel %vm1620, %v1716, 0.0
    %1719 = vrot.lane.b32.xlu0 %v1708, 111
    %v1720 = vpop.permute.xlu0 %1719
    %v1722 = vsel %vm1625, %v1720, 0.0
    %v1723 = vmax.f32 %v1718, %v1722
    %v1724 = vmax.f32 %v1714, %v1723
    %v1725 = vpack.c.bf16 %v1724, %v1724
    %v1726 = vld [vmem:[%s10] sm:$0xf]
    %v1727 = vld [vmem:[%s10 + $0x4] sm:$0xf]
    %v1728 = vld [vmem:[%s10 + $0x8] sm:$0xf]
    %v1729 = vld [vmem:[%s10 + $0xc] sm:$0xf]
    %v1730 = vld [vmem:[%s10 + $0x10] sm:$0xf]
    %v1731 = vld [vmem:[%s10 + $0x14] sm:$0xf]
    %v1732 = vld [vmem:[%s10 + $0x18] sm:$0xf]
    %v1733 = vld [vmem:[%s10 + $0x1c] sm:$0xf]
    %v1734 = vld [vmem:[%s10 + $0x20] sm:$0xf]
    %v1735 = vld [vmem:[%s10 + $0x24] sm:$0xf]
    %v1736 = vld [vmem:[%s10 + $0x28] sm:$0xf]
    %v1737 = vld [vmem:[%s10 + $0x2c] sm:$0xf]
    %v1738 = vld [vmem:[%s10 + $0x30] sm:$0xf]
    %v1739 = vld [vmem:[%s10 + $0x34] sm:$0xf]
    %v1740 = vld [vmem:[%s10 + $0x38] sm:$0xf]
    %v1741 = vld [vmem:[%s10 + $0x3c] sm:$0xf]
    %v1758 = vunpack.c.l.b16 %v1726
    %v1759 = vunpack.c.l.b16 %v1727
    %v1760 = vunpack.c.l.b16 %v1728
    %v1761 = vunpack.c.l.b16 %v1729
    %v1762 = vunpack.c.l.b16 %v1730
    %v1763 = vunpack.c.l.b16 %v1731
    %v1764 = vunpack.c.l.b16 %v1732
    %v1765 = vunpack.c.l.b16 %v1733
    %v1766 = vunpack.c.l.b16 %v1734
    %v1767 = vunpack.c.l.b16 %v1735
    %v1768 = vunpack.c.l.b16 %v1736
    %v1769 = vunpack.c.l.b16 %v1737
    %v1770 = vunpack.c.l.b16 %v1738
    %v1771 = vunpack.c.l.b16 %v1739
    %v1772 = vunpack.c.l.b16 %v1740
    %v1773 = vunpack.c.l.b16 %v1741
    %v1774 = vpack.c.b16 %v1759, %v1758
    %v1775 = vpack.c.b16 %v1761, %v1760
    %v1776 = vpack.c.b16 %v1763, %v1762
    %v1777 = vpack.c.b16 %v1765, %v1764
    %v1778 = vpack.c.b16 %v1767, %v1766
    %v1779 = vpack.c.b16 %v1769, %v1768
    %v1780 = vpack.c.b16 %v1771, %v1770
    %v1781 = vpack.c.b16 %v1773, %v1772
    %1790 = vmatprep.subr.bf16.mxu0 0
    %1791 = vmatpush1.bf16.msra.mxu0 %v1781
    %1792 = vmatprep.subr.bf16.mxu0 0
    %1793 = vmatpush1.bf16.msra.mxu0 %v1780
    %1794 = vmatprep.subr.bf16.mxu0 0
    %1795 = vmatpush1.bf16.msra.mxu0 %v1779
    %1796 = vmatprep.subr.bf16.mxu0 0
    %1797 = vmatpush1.bf16.msra.mxu0 %v1778
    %1798 = vmatprep.subr.bf16.mxu0 0
    %1799 = vmatpush1.bf16.msra.mxu0 %v1777
    %1800 = vmatprep.subr.bf16.mxu0 0
    %1801 = vmatpush1.bf16.msra.mxu0 %v1776
    %1802 = vmatprep.subr.bf16.mxu0 0
    %1803 = vmatpush1.bf16.msra.mxu0 %v1775
    %1804 = vmatprep.subr.bf16.mxu0 0
    %1805 = vmatpush1.bf16.msra.mxu0 %v1774
    %1806 = vmatprep.subr.bf16.mxu0 0
    %1807 = vmatpush2.bf16.msra.mxu0 0
    %1808 = vmatprep.subr.bf16.mxu0 0
    %1809 = vmatpush2.bf16.msra.mxu0 0
    %1810 = vmatprep.subr.bf16.mxu0 0
    %1811 = vmatpush2.bf16.msra.mxu0 0
    %1812 = vmatprep.subr.bf16.mxu0 0
    %1813 = vmatpush2.bf16.msra.mxu0 0
    %1814 = vmatprep.subr.bf16.mxu0 0
    %1815 = vmatpush2.bf16.msra.mxu0 0
    %1816 = vmatprep.subr.bf16.mxu0 0
    %1817 = vmatpush2.bf16.msra.mxu0 0
    %1818 = vmatprep.subr.bf16.mxu0 0
    %1819 = vmatpush2.bf16.msra.mxu0 0
    %1820 = vmatprep.subr.bf16.mxu0 0
    %1821 = vmatpush2.bf16.msra.mxu0 0
    %1822 = vmatprep.mubr.bf16.mxu0 0
    %1823 = vmatmul.mubr.bf16.gmra.mxu0 %v1725
    %v1824 = vpop.f32.mrf.mxu0
    %v1825 = vadd.f32 0.0, %v1824
    %v1826 = vpop.f32.mrf.mxu0
    %v1827 = vpop.f32.mrf.mxu0
    %v1828 = vpop.f32.mrf.mxu0
    %1829 = vdwg.mxu0
    %s1830 = scalar_lea.vmem [#allocation7], 8
    %v1831 = vld [vmem:[%s1830] sm:$0xf]
    %s1832 = scalar_lea.vmem %s5, 16
    %v1833 = vld [vmem:[%s1832] sm:$0xff]
    %1835 = vrot.lane.b32.xlu0 %v1825, 9
    %v1836 = vpop.permute.xlu0 %1835
    %v1838 = vsel %vm1076, 0.0, %v1836
    %1839 = vrot.lane.b32.xlu0 %v1825, 8
    %v1840 = vpop.permute.xlu0 %1839
    %vm1842 = vcmask 64512
    %v1843 = vsel %vm1842, 0.0, %v1840
    %1844 = vrot.lane.b32.xlu0 %v1825, 7
    %v1845 = vpop.permute.xlu0 %1844
    %vm1847 = vcmask 56320
    %v1848 = vsel %vm1847, 0.0, %v1845
    %1849 = vrot.lane.b32.xlu0 %v1825, 1
    %v1850 = vpop.permute.xlu0 %1849
    %v1852 = vsel %vm890, 0.0, %v1850
    %1853 = vrot.lane.b32.xlu0 %v1825, 127
    %v1854 = vpop.permute.xlu0 %1853
    %v1856 = vsel %vm876, %v1854, 0.0
    %1857 = vrot.lane.b32.xlu0 %v1825, 121
    %v1858 = vpop.permute.xlu0 %1857
    %vm1860 = vcmask 203776
    %v1861 = vsel %vm1860, %v1858, 0.0
    %1862 = vrot.lane.b32.xlu0 %v1825, 120
    %v1863 = vpop.permute.xlu0 %1862
    %vm1865 = vcmask 195584
    %v1866 = vsel %vm1865, %v1863, 0.0
    %1867 = vrot.lane.b32.xlu0 %v1825, 119
    %v1868 = vpop.permute.xlu0 %1867
    %vm1870 = vcmask 187392
    %v1871 = vsel %vm1870, %v1868, 0.0
    %v1872 = vld [vmem:[%s8] sm:$0xff]
    %v1873 = vld [vmem:[%s8 + $0x8] sm:$0xff]
    %v1874 = vld [vmem:[%s8 + $0x10] sm:$0xff]
    %v1875 = vld [vmem:[%s8 + $0x18] sm:$0xff]
    %v1876 = vld [vmem:[%s8 + $0x20] sm:$0xff]
    %v1877 = vld [vmem:[%s8 + $0x28] sm:$0xff]
    %v1878 = vld [vmem:[%s8 + $0x30] sm:$0xff]
    %v1879 = vld [vmem:[%s8 + $0x38] sm:$0xff]
    %v1880 = vld [vmem:[%s8 + $0x40] sm:$0xff]
    %v1881 = vmul.f32 %v1838, %v1872
    %v1882 = vmul.f32 %v1843, %v1873
    %v1883 = vmul.f32 %v1848, %v1874
    %v1884 = vmul.f32 %v1852, %v1875
    %v1885 = vmul.f32 %v1825, %v1876
    %v1886 = vmul.f32 %v1856, %v1877
    %v1887 = vmul.f32 %v1861, %v1878
    %v1888 = vmul.f32 %v1866, %v1879
    %v1889 = vmul.f32 %v1871, %v1880
    %v1890 = vpack.c.bf16 %v1882, %v1881
    %v1891 = vpack.c.bf16 %v1884, %v1883
    %v1892 = vpack.c.bf16 %v1886, %v1885
    %v1893 = vpack.c.bf16 %v1888, %v1887
    %v1894 = vpack.c.bf16 %v1889, %v1889
    %1896 = vset.pattern.permute.xlu0 0
    %1897 = vperm.xlu0 %1896, %v1833
    %v1898 = vpop.permute.xlu0 %1897
    %vm1900 = vcmask 588800
    %v1902 = vsel %vm1900, %v1831, 0
    %v1905 = vsel %vm1031, %v1894, 0
    %1907 = vmatprep.subr.bf16.mxu0 0
    %1908 = vmatpush1.bf16.msra.mxu0 0
    %1909 = vmatprep.subr.bf16.mxu0 0
    %1910 = vmatpush1.bf16.msra.mxu0 0
    %1911 = vmatprep.subr.bf16.mxu0 0
    %1912 = vmatpush1.bf16.msra.mxu0 0
    %1913 = vmatprep.subr.bf16.mxu0 0
    %1914 = vmatpush1.bf16.msra.mxu0 %v1905
    %1915 = vmatprep.subr.bf16.mxu0 0
    %1916 = vmatpush1.bf16.msra.mxu0 %v1893
    %1917 = vmatprep.subr.bf16.mxu0 0
    %1918 = vmatpush1.bf16.msra.mxu0 %v1892
    %1919 = vmatprep.subr.bf16.mxu0 0
    %1920 = vmatpush1.bf16.msra.mxu0 %v1891
    %1921 = vmatprep.subr.bf16.mxu0 0
    %1922 = vmatpush1.bf16.msra.mxu0 %v1890
    %1923 = vmatprep.subr.bf16.mxu0 0
    %1924 = vmatpush2.bf16.msra.mxu0 0
    %1925 = vmatprep.subr.bf16.mxu0 0
    %1926 = vmatpush2.bf16.msra.mxu0 0
    %1927 = vmatprep.subr.bf16.mxu0 0
    %1928 = vmatpush2.bf16.msra.mxu0 0
    %1929 = vmatprep.subr.bf16.mxu0 0
    %1930 = vmatpush2.bf16.msra.mxu0 0
    %1931 = vmatprep.subr.bf16.mxu0 0
    %1932 = vmatpush2.bf16.msra.mxu0 0
    %1933 = vmatprep.subr.bf16.mxu0 0
    %1934 = vmatpush2.bf16.msra.mxu0 0
    %1935 = vmatprep.subr.bf16.mxu0 0
    %1936 = vmatpush2.bf16.msra.mxu0 0
    %1937 = vmatprep.subr.bf16.mxu0 0
    %1938 = vmatpush2.bf16.msra.mxu0 0
    %1939 = vmatprep.mubr.bf16.mxu0 0
    %1940 = vmatmul.mubr.bf16.gmra.mxu0 %v1902
    %v1941 = vpop.f32.mrf.mxu0
    %v1942 = vadd.f32 %v1898, %v1941
    %v1943 = vpop.f32.mrf.mxu0
    %v1944 = vpop.f32.mrf.mxu0
    %v1945 = vpop.f32.mrf.mxu0
    %1946 = vdwg.mxu0
    %v1947 = vmax.f32 %v1942, 0.0
    %v1949 = vrot.slane %v1947, 1
    %1950 = vrot.lane.b32.xlu0 %v1949, 32
    %v1951 = vpop.permute.xlu0 %1950
    %v1953 = vrot.slane %v1947, 2
    %1954 = vrot.lane.b32.xlu0 %v1953, 64
    %v1955 = vpop.permute.xlu0 %1954
    %v1957 = vrot.slane %v1947, 3
    %1958 = vrot.lane.b32.xlu0 %v1957, 96
    %v1959 = vpop.permute.xlu0 %1958
    %v1961 = vrot.slane %v1947, 4
    %v1963 = vrot.slane %v1947, 5
    %1964 = vrot.lane.b32.xlu0 %v1963, 32
    %v1965 = vpop.permute.xlu0 %1964
    %v1967 = vrot.slane %v1947, 6
    %1968 = vrot.lane.b32.xlu0 %v1967, 64
    %v1969 = vpop.permute.xlu0 %1968
    %v1971 = vrot.slane %v1947, 7
    %1972 = vrot.lane.b32.xlu0 %v1971, 96
    %v1973 = vpop.permute.xlu0 %1972
    %v1975 = vsel %vm145, %v1947, %v1951
    %v1976 = vsel %vm819, %v1975, %v1955
    %v1977 = vsel %vm821, %v1976, %v1959
    %v1978 = vsel %vm145, %v1961, %v1965
    %v1979 = vsel %vm819, %v1978, %v1969
    %v1980 = vsel %vm821, %v1979, %v1973
    %v1981 = vpack.c.bf16 %v1977, %v1977
    %v1982 = vpack.c.bf16 %v1980, %v1980
    %v1983 = vld [vmem:[%s11] sm:$0xf]
    %v1984 = vld [vmem:[%s11 + $0x4] sm:$0xf]
    %v1985 = vld [vmem:[%s11 + $0x8] sm:$0xf]
    %v1986 = vld [vmem:[%s11 + $0xc] sm:$0xf]
    %v1987 = vld [vmem:[%s11 + $0x10] sm:$0xf]
    %v1988 = vld [vmem:[%s11 + $0x14] sm:$0xf]
    %v1989 = vld [vmem:[%s11 + $0x18] sm:$0xf]
    %v1990 = vld [vmem:[%s11 + $0x1c] sm:$0xf]
    %v1991 = vld [vmem:[%s11 + $0x20] sm:$0xf]
    %v1992 = vld [vmem:[%s11 + $0x24] sm:$0xf]
    %v1993 = vld [vmem:[%s11 + $0x28] sm:$0xf]
    %v1994 = vld [vmem:[%s11 + $0x2c] sm:$0xf]
    %v1995 = vld [vmem:[%s11 + $0x30] sm:$0xf]
    %v1996 = vld [vmem:[%s11 + $0x34] sm:$0xf]
    %v1997 = vld [vmem:[%s11 + $0x38] sm:$0xf]
    %v1998 = vld [vmem:[%s11 + $0x3c] sm:$0xf]
    %v1999 = vld [vmem:[%s11 + $0x40] sm:$0xf]
    %v2000 = vld [vmem:[%s11 + $0x44] sm:$0xf]
    %v2001 = vld [vmem:[%s11 + $0x48] sm:$0xf]
    %v2002 = vld [vmem:[%s11 + $0x4c] sm:$0xf]
    %v2003 = vld [vmem:[%s11 + $0x50] sm:$0xf]
    %v2004 = vld [vmem:[%s11 + $0x54] sm:$0xf]
    %v2005 = vld [vmem:[%s11 + $0x58] sm:$0xf]
    %v2006 = vld [vmem:[%s11 + $0x5c] sm:$0xf]
    %v2007 = vld [vmem:[%s11 + $0x60] sm:$0xf]
    %v2008 = vld [vmem:[%s11 + $0x64] sm:$0xf]
    %v2009 = vld [vmem:[%s11 + $0x68] sm:$0xf]
    %v2010 = vld [vmem:[%s11 + $0x6c] sm:$0xf]
    %v2011 = vld [vmem:[%s11 + $0x70] sm:$0xf]
    %v2012 = vld [vmem:[%s11 + $0x74] sm:$0xf]
    %v2013 = vld [vmem:[%s11 + $0x78] sm:$0xf]
    %v2014 = vld [vmem:[%s11 + $0x7c] sm:$0xf]
    %v2015 = vld [vmem:[#allocation10] sm:$0x1]
    %v2048 = vunpack.c.l.b16 %v1983
    %v2049 = vunpack.c.l.b16 %v1984
    %v2050 = vunpack.c.l.b16 %v1985
    %v2051 = vunpack.c.l.b16 %v1986
    %v2052 = vunpack.c.l.b16 %v1987
    %v2053 = vunpack.c.l.b16 %v1988
    %v2054 = vunpack.c.l.b16 %v1989
    %v2055 = vunpack.c.l.b16 %v1990
    %v2056 = vunpack.c.l.b16 %v1991
    %v2057 = vunpack.c.l.b16 %v1992
    %v2058 = vunpack.c.l.b16 %v1993
    %v2059 = vunpack.c.l.b16 %v1994
    %v2060 = vunpack.c.l.b16 %v1995
    %v2061 = vunpack.c.l.b16 %v1996
    %v2062 = vunpack.c.l.b16 %v1997
    %v2063 = vunpack.c.l.b16 %v1998
    %v2064 = vunpack.c.l.b16 %v1999
    %v2065 = vunpack.c.l.b16 %v2000
    %v2066 = vunpack.c.l.b16 %v2001
    %v2067 = vunpack.c.l.b16 %v2002
    %v2068 = vunpack.c.l.b16 %v2003
    %v2069 = vunpack.c.l.b16 %v2004
    %v2070 = vunpack.c.l.b16 %v2005
    %v2071 = vunpack.c.l.b16 %v2006
    %v2072 = vunpack.c.l.b16 %v2007
    %v2073 = vunpack.c.l.b16 %v2008
    %v2074 = vunpack.c.l.b16 %v2009
    %v2075 = vunpack.c.l.b16 %v2010
    %v2076 = vunpack.c.l.b16 %v2011
    %v2077 = vunpack.c.l.b16 %v2012
    %v2078 = vunpack.c.l.b16 %v2013
    %v2079 = vunpack.c.l.b16 %v2014
    %v2080 = vpack.c.b16 %v2049, %v2048
    %v2081 = vpack.c.b16 %v2051, %v2050
    %v2082 = vpack.c.b16 %v2053, %v2052
    %v2083 = vpack.c.b16 %v2055, %v2054
    %v2084 = vpack.c.b16 %v2057, %v2056
    %v2085 = vpack.c.b16 %v2059, %v2058
    %v2086 = vpack.c.b16 %v2061, %v2060
    %v2087 = vpack.c.b16 %v2063, %v2062
    %v2088 = vpack.c.b16 %v2065, %v2064
    %v2089 = vpack.c.b16 %v2067, %v2066
    %v2090 = vpack.c.b16 %v2069, %v2068
    %v2091 = vpack.c.b16 %v2071, %v2070
    %v2092 = vpack.c.b16 %v2073, %v2072
    %v2093 = vpack.c.b16 %v2075, %v2074
    %v2094 = vpack.c.b16 %v2077, %v2076
    %v2095 = vpack.c.b16 %v2079, %v2078
    %2112 = vmatprep.subr.bf16.mxu0 0
    %2113 = vmatpush1.bf16.msra.mxu0 %v2087
    %2114 = vmatprep.subr.bf16.mxu0 0
    %2115 = vmatpush1.bf16.msra.mxu0 %v2086
    %2116 = vmatprep.subr.bf16.mxu0 0
    %2117 = vmatpush1.bf16.msra.mxu0 %v2085
    %2118 = vmatprep.subr.bf16.mxu0 0
    %2119 = vmatpush1.bf16.msra.mxu0 %v2084
    %2120 = vmatprep.subr.bf16.mxu0 0
    %2121 = vmatpush1.bf16.msra.mxu0 %v2083
    %2122 = vmatprep.subr.bf16.mxu0 0
    %2123 = vmatpush1.bf16.msra.mxu0 %v2082
    %2124 = vmatprep.subr.bf16.mxu0 0
    %2125 = vmatpush1.bf16.msra.mxu0 %v2081
    %2126 = vmatprep.subr.bf16.mxu0 0
    %2127 = vmatpush1.bf16.msra.mxu0 %v2080
    %2128 = vmatprep.subr.bf16.mxu0 0
    %2129 = vmatpush2.bf16.msra.mxu0 %v2095
    %2130 = vmatprep.subr.bf16.mxu0 0
    %2131 = vmatpush2.bf16.msra.mxu0 %v2094
    %2132 = vmatprep.subr.bf16.mxu0 0
    %2133 = vmatpush2.bf16.msra.mxu0 %v2093
    %2134 = vmatprep.subr.bf16.mxu0 0
    %2135 = vmatpush2.bf16.msra.mxu0 %v2092
    %2136 = vmatprep.subr.bf16.mxu0 0
    %2137 = vmatpush2.bf16.msra.mxu0 %v2091
    %2138 = vmatprep.subr.bf16.mxu0 0
    %2139 = vmatpush2.bf16.msra.mxu0 %v2090
    %2140 = vmatprep.subr.bf16.mxu0 0
    %2141 = vmatpush2.bf16.msra.mxu0 %v2089
    %2142 = vmatprep.subr.bf16.mxu0 0
    %2143 = vmatpush2.bf16.msra.mxu0 %v2088
    %2144 = vmatprep.mubr.bf16.mxu0 %v1982
    %2145 = vmatmul.mubr.bf16.gmra.mxu0 %v1981
    %v2146 = vpop.f32.mrf.mxu0
    %v2147 = vadd.f32 %v2015, %v2146
    %v2148 = vpop.f32.mrf.mxu0
    %v2149 = vpop.f32.mrf.mxu0
    %v2150 = vpop.f32.mrf.mxu0
    %2151 = vdwg.mxu0
    %v2152 = vmax.f32 %v2147, 0.0
    %v2153 = vpack.c.bf16 %v2152, %v2152
    %v2154 = vld [vmem:[%s11 + $0x80] sm:$0xf]
    %v2155 = vld [vmem:[%s11 + $0x84] sm:$0xf]
    %v2156 = vld [vmem:[%s11 + $0x88] sm:$0xf]
    %v2157 = vld [vmem:[%s11 + $0x8c] sm:$0xf]
    %v2158 = vld [vmem:[#allocation10 + $0x1] sm:$0x1]
    %v2163 = vunpack.c.l.b16 %v2154
    %v2164 = vunpack.c.l.b16 %v2155
    %v2165 = vunpack.c.l.b16 %v2156
    %v2166 = vunpack.c.l.b16 %v2157
    %v2167 = vpack.c.b16 %v2164, %v2163
    %v2168 = vpack.c.b16 %v2166, %v2165
    %v2172 = vsel %vm145, %v2153, 0
    %2174 = vmatprep.subr.bf16.mxu0 0
    %2175 = vmatpush1.bf16.msra.mxu0 0
    %2176 = vmatprep.subr.bf16.mxu0 0
    %2177 = vmatpush1.bf16.msra.mxu0 0
    %2178 = vmatprep.subr.bf16.mxu0 0
    %2179 = vmatpush1.bf16.msra.mxu0 0
    %2180 = vmatprep.subr.bf16.mxu0 0
    %2181 = vmatpush1.bf16.msra.mxu0 0
    %2182 = vmatprep.subr.bf16.mxu0 0
    %2183 = vmatpush1.bf16.msra.mxu0 0
    %2184 = vmatprep.subr.bf16.mxu0 0
    %2185 = vmatpush1.bf16.msra.mxu0 0
    %2186 = vmatprep.subr.bf16.mxu0 0
    %2187 = vmatpush1.bf16.msra.mxu0 %v2168
    %2188 = vmatprep.subr.bf16.mxu0 0
    %2189 = vmatpush1.bf16.msra.mxu0 %v2167
    %2190 = vmatprep.subr.bf16.mxu0 0
    %2191 = vmatpush2.bf16.msra.mxu0 0
    %2192 = vmatprep.subr.bf16.mxu0 0
    %2193 = vmatpush2.bf16.msra.mxu0 0
    %2194 = vmatprep.subr.bf16.mxu0 0
    %2195 = vmatpush2.bf16.msra.mxu0 0
    %2196 = vmatprep.subr.bf16.mxu0 0
    %2197 = vmatpush2.bf16.msra.mxu0 0
    %2198 = vmatprep.subr.bf16.mxu0 0
    %2199 = vmatpush2.bf16.msra.mxu0 0
    %2200 = vmatprep.subr.bf16.mxu0 0
    %2201 = vmatpush2.bf16.msra.mxu0 0
    %2202 = vmatprep.subr.bf16.mxu0 0
    %2203 = vmatpush2.bf16.msra.mxu0 0
    %2204 = vmatprep.subr.bf16.mxu0 0
    %2205 = vmatpush2.bf16.msra.mxu0 0
    %2206 = vmatprep.mubr.bf16.mxu0 0
    %2207 = vmatmul.mubr.bf16.gmra.mxu0 %v2172
    %v2208 = vpop.f32.mrf.mxu0
    %v2209 = vadd.f32 %v2158, %v2208
    %v2210 = vpop.f32.mrf.mxu0
    %v2211 = vpop.f32.mrf.mxu0
    %v2212 = vpop.f32.mrf.mxu0
    %2213 = vdwg.mxu0
    %v2214 = vxor.u32 %v2209, 2147483648
    %v2215 = vmul.f32 %v2214, 1.442695
    %v2216 = vpow.pop %v2215
    %v2217 = vadd.f32 %v2216, 1.0
    %v2218 = vrcp.pop %v2217
    %v2219 = vmul.f32 1.0, %v2218
    %vm2220 = vcmask 24576
    %2221 = vst.msk [vmem:[#allocation11] sm:$0x1] %vm2220, %v2219
    // Predicated region
    $region74: #{forward.1} parent=1 // pred_check
      _
    $region75: #{forward.1} parent=1 // pred_check_branch
      %2223 = sbr.rel (0) target = $region77
    $region76: #{forward.1} parent=1 // pred_region
      %s2225 = ssub.s32 16, 16
      %2226 = vsyncadd [#allocation4], %s2225
      %s2228 = sshll.u32 [#allocation11], 4
      %s2229 = int_to_ptr.vmem [resolvable:$true] %s2228
      %2231 = dma.vmem_to_hbm [thread:$0]  %s2229, 16, %s13, [#allocation4]
    $region77: #{forward.1} parent=1 // pred_fallthru
      _
    // Predicated region
    $region78: #{forward.1} parent=1 // pred_check
      _
    $region79: #{forward.1} parent=1 // pred_check_branch
      %2233 = sbr.rel (0) target = $region81
    $region80: #{forward.1} parent=1 // pred_region
      %2234 = dma.done [#allocation4], 16
    $region81: #{forward.1} parent=1 // pred_fallthru
      _
    %2235 = vsyncpa [#allocation3], 1
    %2236 = vsyncpa [#allocation6], 1
    %2237 = vsyncpa [#allocation9], 1
    %2238 = vsyncpa [#allocation4], 1

</llo_original>
